<compile_context>
chip_gen: v6e
topology: v6e:2x2x1
jax: 0.10.0
libtpu: 0.0.40
codegen_flags: <defaults>
</compile_context>

<pallas_src>
import jax
import jax.numpy as jnp
from jax.experimental import pallas as pl
from jax.experimental.pallas import tpu as pltpu

LATENT = 2
H1 = 256
H2 = 512
OUT = 28 * 28          # 784 (equals full last dim of the output -> legal block)
TB_MAX = 512           # batch tile; fits v5e's 16 MiB scoped-VMEM default


def _round_up(n, m):
    return ((n + m - 1) // m) * m


def decoder_kernel(x_ref, w1_ref, b1_ref, w2_ref, b2_ref, w3_ref, b3_ref, o_ref):
    # x: (TB, 2) f32.  w2/w3 arrive pre-packed as bf16; biases are f32.
    x = x_ref[...]
    w1 = w1_ref[...]                              # (2, 256) f32

    # Layer 1: K=2 -> VPU outer product instead of a (nearly idle) MXU pass.
    h1 = b1_ref[...]                              # (1, 256) broadcasts to (TB, 256)
    for k in range(LATENT):                       # static unroll, LATENT == 2
        h1 = h1 + x[:, k:k + 1] * w1[k:k + 1, :]
    h1 = jnp.maximum(h1, 0.0)                     # ReLU, f32

    # Layer 2: bf16 MXU matmul, f32 accumulate, f32 bias/ReLU.
    h2 = jnp.dot(h1.astype(jnp.bfloat16), w2_ref[...],
                 preferred_element_type=jnp.float32) + b2_ref[...]
    h2 = jnp.maximum(h2, 0.0)

    # Layer 3: bf16 MXU matmul straight into the real 784 output columns.
    logits = jnp.dot(h2.astype(jnp.bfloat16), w3_ref[...],
                     preferred_element_type=jnp.float32) + b3_ref[...]

    # sigmoid(x) = 1 / (1 + exp(-x)): exp and reciprocal both on the EUP slot.
    o_ref[...] = pl.reciprocal(1.0 + jnp.exp(-logits), approx=True)


def _choose_tiling(B):
    """Pick (TB, Bp) such that Bp % TB == 0, TB % 8 == 0, and the grid has
    >= 2 steps whenever the padded batch can be split (v7x dual-TC)."""
    b8 = _round_up(B, 8)
    tb = min(TB_MAX, b8)
    if b8 // tb < 2 and b8 >= 16:
        tb = _round_up(b8 // 2, 8)
    bp = _round_up(B, tb)
    return tb, bp


def prepack_params(params):
    """One-time weight prep: cast the heavy MXU weights to bf16."""
    w1, b1, w2, b2, w3, b3 = params
    return (w1, b1, w2.astype(jnp.bfloat16), b2, w3.astype(jnp.bfloat16), b3)


def decoder_forward(x, packed_params):
    """x: (B, LATENT) float32 -> (B, 1, 28, 28) float32."""
    w1, b1, w2_bf16, b2, w3_bf16, b3 = packed_params
    B = x.shape[0]

    TB, Bp = _choose_tiling(B)
    if Bp != B:
        x = jnp.pad(x, ((0, Bp - B), (0, 0)))

    grid = (Bp // TB,)

    cost = pl.CostEstimate(
        flops=2 * Bp * (LATENT * H1 + H1 * H2 + H2 * OUT),
        transcendentals=2 * Bp * OUT,               # exp + reciprocal
        bytes_accessed=(4 * Bp * LATENT + 4 * Bp * OUT
                        + 4 * LATENT * H1 + 2 * H1 * H2 + 2 * H2 * OUT
                        + 4 * (H1 + H2 + OUT)),
    )

    flat = pl.pallas_call(
        decoder_kernel,
        out_shape=jax.ShapeDtypeStruct((Bp, OUT), jnp.float32),
        grid=grid,
        in_specs=[
            pl.BlockSpec((TB, LATENT), lambda i: (i, 0)),     # x (tiled over batch)
            pl.BlockSpec((LATENT, H1), lambda i: (0, 0)),     # w1 (resident)
            pl.BlockSpec((1, H1), lambda i: (0, 0)),          # b1 (resident)
            pl.BlockSpec((H1, H2), lambda i: (0, 0)),         # w2 (resident, bf16)
            pl.BlockSpec((1, H2), lambda i: (0, 0)),          # b2 (resident)
            pl.BlockSpec((H2, OUT), lambda i: (0, 0)),        # w3 (resident, bf16)
            pl.BlockSpec((1, OUT), lambda i: (0, 0)),         # b3 (resident)
        ],
        out_specs=pl.BlockSpec((TB, OUT), lambda i: (i, 0)),
        compiler_params=pltpu.CompilerParams(
            dimension_semantics=("parallel",),
        ),
        cost_estimate=cost,
    )(x, w1, b1, w2_bf16, b2, w3_bf16, b3)

    if Bp != B:
        flat = flat[:B]
    # Reshape(-1, 1, 28, 28): pure layout glue, done outside the kernel.
    return flat.reshape(B, 1, 28, 28)


def init_params(key):
    """Deterministic init mimicking nn.Linear's U(-1/sqrt(fan_in), 1/sqrt(fan_in))."""
    ks = jax.random.split(key, 6)

    def linear(kw, kb, fan_in, fan_out):
        bound = 1.0 / jnp.sqrt(fan_in)
        w = jax.random.uniform(kw, (fan_in, fan_out), jnp.float32, -bound, bound)
        b = jax.random.uniform(kb, (1, fan_out), jnp.float32, -bound, bound)
        return w, b

    w1, b1 = linear(ks[0], ks[1], LATENT, H1)
    w2, b2 = linear(ks[2], ks[3], H1, H2)
    w3, b3 = linear(ks[4], ks[5], H2, OUT)
    return (w1, b1, w2, b2, w3, b3)


def decoder_reference(x, params):
    """Pure-JAX f32 reference for correctness checking."""
    w1, b1, w2, b2, w3, b3 = params
    h1 = jnp.maximum(x @ w1 + b1, 0.0)
    h2 = jnp.maximum(h1 @ w2 + b2, 0.0)
    out = jax.nn.sigmoid(h2 @ w3 + b3)
    return out.reshape(x.shape[0], 1, 28, 28)


if __name__ == "__main__":
    key = jax.random.PRNGKey(0)
    k_param, k_x = jax.random.split(key)

    params = init_params(k_param)
    packed = prepack_params(params)          # one-time bf16 weight prep

    B = 8
    x = jax.random.normal(k_x, (B, LATENT), jnp.float32)

    out = decoder_forward(x, packed)
    out = jax.block_until_ready(out)

    ref = decoder_reference(x, params)
    assert out.shape == (B, 1, 28, 28), out.shape
    # bf16 MXU inputs, f32 accumulation, approx EUP reciprocal ahead of a
    # sigmoid: loosen tolerance accordingly.
    assert jnp.allclose(out, ref, atol=2e-2, rtol=0.0), "mismatch vs reference"

    print("KERNEL_OK")
</pallas_src>

<mosaic_0001>
module attributes {stable_mosaic.version = 11 : i64} {
  func.func @decoder_kernel(%arg0: i32, %arg1: memref<8x2xf32, #tpu.memory_space<vmem>>, %arg2: memref<2x256xf32, #tpu.memory_space<vmem>>, %arg3: memref<1x256xf32, #tpu.memory_space<vmem>>, %arg4: memref<256x512xbf16, #tpu.memory_space<vmem>>, %arg5: memref<1x512xf32, #tpu.memory_space<vmem>>, %arg6: memref<512x784xbf16, #tpu.memory_space<vmem>>, %arg7: memref<1x784xf32, #tpu.memory_space<vmem>>, %arg8: memref<8x784xf32, #tpu.memory_space<vmem>>) attributes {dimension_semantics = [#tpu.dimension_semantics<parallel>], iteration_bounds = array<i64: 1>, scalar_prefetch = 0 : i64, scratch_operands = 0 : i64, tpu.core_type = #tpu.core_type<tc>, window_params = [{transform_indices = @transform_0, window_bounds = array<i64: 8, 2>}, {pipeline_mode = #tpu.pipeline_mode<synchronous>, transform_indices = @transform_1, window_bounds = array<i64: 2, 256>}, {pipeline_mode = #tpu.pipeline_mode<synchronous>, transform_indices = @transform_2, window_bounds = array<i64: 1, 256>}, {pipeline_mode = #tpu.pipeline_mode<synchronous>, transform_indices = @transform_3, window_bounds = array<i64: 256, 512>}, {pipeline_mode = #tpu.pipeline_mode<synchronous>, transform_indices = @transform_4, window_bounds = array<i64: 1, 512>}, {pipeline_mode = #tpu.pipeline_mode<synchronous>, transform_indices = @transform_5, window_bounds = array<i64: 512, 784>}, {pipeline_mode = #tpu.pipeline_mode<synchronous>, transform_indices = @transform_6, window_bounds = array<i64: 1, 784>}, {transform_indices = @transform_7, window_bounds = array<i64: 8, 784>}]} {
    %c0 = arith.constant 0 : index
    %c0_0 = arith.constant 0 : index
    %0 = vector.load %arg1[%c0, %c0_0] : memref<8x2xf32, #tpu.memory_space<vmem>>, vector<8x2xf32>
    %c0_1 = arith.constant 0 : index
    %c0_2 = arith.constant 0 : index
    %1 = vector.load %arg2[%c0_1, %c0_2] : memref<2x256xf32, #tpu.memory_space<vmem>>, vector<2x256xf32>
    %c0_3 = arith.constant 0 : index
    %c0_4 = arith.constant 0 : index
    %2 = vector.load %arg3[%c0_3, %c0_4] : memref<1x256xf32, #tpu.memory_space<vmem>>, vector<1x256xf32>
    %3 = vector.extract_strided_slice %0 {offsets = [0, 0], sizes = [8, 1], strides = [1, 1]} : vector<8x2xf32> to vector<8x1xf32>
    %4 = vector.extract_strided_slice %1 {offsets = [0, 0], sizes = [1, 256], strides = [1, 1]} : vector<2x256xf32> to vector<1x256xf32>
    %5 = vector.broadcast %3 : vector<8x1xf32> to vector<8x256xf32>
    %6 = vector.broadcast %4 : vector<1x256xf32> to vector<8x256xf32>
    %7 = arith.mulf %5, %6 : vector<8x256xf32>
    %8 = vector.broadcast %2 : vector<1x256xf32> to vector<8x256xf32>
    %9 = arith.addf %8, %7 : vector<8x256xf32>
    %10 = vector.extract_strided_slice %0 {offsets = [0, 1], sizes = [8, 1], strides = [1, 1]} : vector<8x2xf32> to vector<8x1xf32>
    %11 = vector.extract_strided_slice %1 {offsets = [1, 0], sizes = [1, 256], strides = [1, 1]} : vector<2x256xf32> to vector<1x256xf32>
    %12 = vector.broadcast %10 : vector<8x1xf32> to vector<8x256xf32>
    %13 = vector.broadcast %11 : vector<1x256xf32> to vector<8x256xf32>
    %14 = arith.mulf %12, %13 : vector<8x256xf32>
    %15 = arith.addf %9, %14 : vector<8x256xf32>
    %cst = arith.constant 0.000000e+00 : f32
    %16 = vector.broadcast %cst : f32 to vector<8x256xf32>
    %17 = arith.maximumf %15, %16 : vector<8x256xf32>
    %18 = arith.truncf %17 : vector<8x256xf32> to vector<8x256xbf16>
    %c0_5 = arith.constant 0 : index
    %c0_6 = arith.constant 0 : index
    %19 = vector.load %arg4[%c0_5, %c0_6] : memref<256x512xbf16, #tpu.memory_space<vmem>>, vector<256x512xbf16>
    %cst_7 = arith.constant dense<0.000000e+00> : vector<8x512xf32>
    %20 = tpu.matmul %18, %19, %cst_7 {dimension_numbers = #tpu.dot_dimension_numbers<[1], [0], [0], [1], [0, 0, 1, 1], [], []>} : vector<8x256xbf16>, vector<256x512xbf16>, vector<8x512xf32> -> vector<8x512xf32>
    %c0_8 = arith.constant 0 : index
    %c0_9 = arith.constant 0 : index
    %21 = vector.load %arg5[%c0_8, %c0_9] : memref<1x512xf32, #tpu.memory_space<vmem>>, vector<1x512xf32>
    %22 = vector.broadcast %21 : vector<1x512xf32> to vector<8x512xf32>
    %23 = arith.addf %20, %22 : vector<8x512xf32>
    %cst_10 = arith.constant 0.000000e+00 : f32
    %24 = vector.broadcast %cst_10 : f32 to vector<8x512xf32>
    %25 = arith.maximumf %23, %24 : vector<8x512xf32>
    %26 = arith.truncf %25 : vector<8x512xf32> to vector<8x512xbf16>
    %c0_11 = arith.constant 0 : index
    %c0_12 = arith.constant 0 : index
    %27 = vector.load %arg6[%c0_11, %c0_12] : memref<512x784xbf16, #tpu.memory_space<vmem>>, vector<512x784xbf16>
    %cst_13 = arith.constant dense<0.000000e+00> : vector<8x784xf32>
    %28 = tpu.matmul %26, %27, %cst_13 {dimension_numbers = #tpu.dot_dimension_numbers<[1], [0], [0], [1], [0, 0, 1, 1], [], []>} : vector<8x512xbf16>, vector<512x784xbf16>, vector<8x784xf32> -> vector<8x784xf32>
    %c0_14 = arith.constant 0 : index
    %c0_15 = arith.constant 0 : index
    %29 = vector.load %arg7[%c0_14, %c0_15] : memref<1x784xf32, #tpu.memory_space<vmem>>, vector<1x784xf32>
    %30 = vector.broadcast %29 : vector<1x784xf32> to vector<8x784xf32>
    %31 = arith.addf %28, %30 : vector<8x784xf32>
    %cst_16 = arith.constant 0.000000e+00 : f32
    %32 = vector.broadcast %cst_16 : f32 to vector<8x784xf32>
    %33 = arith.subf %32, %31 : vector<8x784xf32>
    %34 = math.exp %33 : vector<8x784xf32>
    %cst_17 = arith.constant 1.000000e+00 : f32
    %35 = vector.broadcast %cst_17 : f32 to vector<8x784xf32>
    %36 = arith.addf %35, %34 : vector<8x784xf32>
    %37 = tpu.reciprocal %36 {approx = true} : vector<8x784xf32> -> vector<8x784xf32>
    %c0_18 = arith.constant 0 : index
    %c0_19 = arith.constant 0 : index
    %38 = vector.load %arg8[%c0_18, %c0_19] : memref<8x784xf32, #tpu.memory_space<vmem>>, vector<8x784xf32>
    tpu.vector_store %arg8[%c0_18, %c0_19], %37 {strides = array<i32>} : memref<8x784xf32, #tpu.memory_space<vmem>>, vector<8x784xf32>,
    return
  }
  func.func @transform_0(%arg0: i32) -> (i32, i32) {
    %c0_i32 = arith.constant 0 : i32
    %c0_i32_0 = arith.constant 0 : i32
    return %arg0, %c0_i32 : i32, i32
  }
  func.func @transform_1(%arg0: i32) -> (i32, i32) {
    %c0_i32 = arith.constant 0 : i32
    %c0_i32_0 = arith.constant 0 : i32
    %c0_i32_1 = arith.constant 0 : i32
    return %c0_i32, %c0_i32_0 : i32, i32
  }
  func.func @transform_2(%arg0: i32) -> (i32, i32) {
    %c0_i32 = arith.constant 0 : i32
    %c0_i32_0 = arith.constant 0 : i32
    %c0_i32_1 = arith.constant 0 : i32
    return %c0_i32, %c0_i32_0 : i32, i32
  }
  func.func @transform_3(%arg0: i32) -> (i32, i32) {
    %c0_i32 = arith.constant 0 : i32
    %c0_i32_0 = arith.constant 0 : i32
    %c0_i32_1 = arith.constant 0 : i32
    return %c0_i32, %c0_i32_0 : i32, i32
  }
  func.func @transform_4(%arg0: i32) -> (i32, i32) {
    %c0_i32 = arith.constant 0 : i32
    %c0_i32_0 = arith.constant 0 : i32
    %c0_i32_1 = arith.constant 0 : i32
    return %c0_i32, %c0_i32_0 : i32, i32
  }
  func.func @transform_5(%arg0: i32) -> (i32, i32) {
    %c0_i32 = arith.constant 0 : i32
    %c0_i32_0 = arith.constant 0 : i32
    %c0_i32_1 = arith.constant 0 : i32
    return %c0_i32, %c0_i32_0 : i32, i32
  }
  func.func @transform_6(%arg0: i32) -> (i32, i32) {
    %c0_i32 = arith.constant 0 : i32
    %c0_i32_0 = arith.constant 0 : i32
    %c0_i32_1 = arith.constant 0 : i32
    return %c0_i32, %c0_i32_0 : i32, i32
  }
  func.func @transform_7(%arg0: i32) -> (i32, i32) {
    %c0_i32 = arith.constant 0 : i32
    %c0_i32_0 = arith.constant 0 : i32
    return %arg0, %c0_i32 : i32, i32
  }
}

</mosaic_0001>

<llo_original>
// kernel: tpu_custom_call.1
$region0: #{tpu_custom_call.1}
  #allocation0 [shape = 'u32[]', space=smem, size = 0x4, offset = 0x4, fixed_abs, tag = 'smem constant byte address 0x4 - core index']
  #allocation1 [shape = 'u32[144,128]{1,0:T(1,128)}', space=vmem, size = 0x12000, scoped, tag = 'internal scratch']
  %s0 = inlined_call_operand.vmem [shape: f32[8,2], index: 0, kind: input, shape index: {}]
  %s1 = inlined_call_operand.vmem [shape: f32[2,256], index: 1, kind: input, shape index: {}]
  %s2 = inlined_call_operand.vmem [shape: f32[1,256], index: 2, kind: input, shape index: {}]
  %s3 = inlined_call_operand.vmem [shape: bf16[256,512], index: 3, kind: input, shape index: {}]
  %s4 = inlined_call_operand.vmem [shape: f32[1,512], index: 4, kind: input, shape index: {}]
  %s5 = inlined_call_operand.vmem [shape: bf16[512,784], index: 5, kind: input, shape index: {}]
  %s6 = inlined_call_operand.vmem [shape: f32[1,784], index: 6, kind: input, shape index: {}]
  %s7 = inlined_call_operand.hbm [shape: f32[8,784], index: 7, kind: output, shape index: {}]
  %s8 = sld [smem:[#allocation0]]
  $region38: #{tpu_custom_call.1} parent=0
    _
  %s10 = ssub.s32 1, %s8
  %s11 = scalar_select 0, %s10, %s8
  $region1: #{tpu_custom_call.1} parent=0
    #allocation2 [shape = 'u8[28672]{0}', space=vmem, size = 0x7000, scoped, tag = 'output window, operand 0, single buffered']
    #allocation3 [shape = 's32[1]{0}', space=sflag, size = 0x4, scoped, tag = 'scoped memory for tpu_custom_call.1']
    %12 = vsyncpa [#allocation3], 0
    // Predicated region
    $region2: #{tpu_custom_call.1} parent=1 // pred_check
      _
    $region3: #{tpu_custom_call.1} parent=1 // pred_check_branch
      %14 = sbr.rel (0) target = $region5
    $region4: #{tpu_custom_call.1} parent=1 // pred_region
      _
    $region5: #{tpu_custom_call.1} parent=1 // pred_fallthru
      _
    // Predicated region
    $region6: #{tpu_custom_call.1} parent=1 // pred_check
      _
    $region7: #{tpu_custom_call.1} parent=1 // pred_check_branch
      %16 = sbr.rel (0) target = $region9
    $region8: #{tpu_custom_call.1} parent=1 // pred_region
      _
    $region9: #{tpu_custom_call.1} parent=1 // pred_fallthru
      _
    // Predicated region
    $region10: #{tpu_custom_call.1} parent=1 // pred_check
      _
    $region11: #{tpu_custom_call.1} parent=1 // pred_check_branch
      %18 = sbr.rel (0) target = $region13
    $region12: #{tpu_custom_call.1} parent=1 // pred_region
      _
    $region13: #{tpu_custom_call.1} parent=1 // pred_fallthru
      _
    // Predicated region
    $region14: #{tpu_custom_call.1} parent=1 // pred_check
      _
    $region15: #{tpu_custom_call.1} parent=1 // pred_check_branch
      %20 = sbr.rel (0) target = $region17
    $region16: #{tpu_custom_call.1} parent=1 // pred_region
      _
    $region17: #{tpu_custom_call.1} parent=1 // pred_fallthru
      _
    // Predicated region
    $region18: #{tpu_custom_call.1} parent=1 // pred_check
      _
    $region19: #{tpu_custom_call.1} parent=1 // pred_check_branch
      %22 = sbr.rel (0) target = $region21
    $region20: #{tpu_custom_call.1} parent=1 // pred_region
      _
    $region21: #{tpu_custom_call.1} parent=1 // pred_fallthru
      _
    // Predicated region
    $region22: #{tpu_custom_call.1} parent=1 // pred_check
      _
    $region23: #{tpu_custom_call.1} parent=1 // pred_check_branch
      %24 = sbr.rel (0) target = $region25
    $region24: #{tpu_custom_call.1} parent=1 // pred_region
      _
    $region25: #{tpu_custom_call.1} parent=1 // pred_fallthru
      _
    // Predicated region
    $region26: #{tpu_custom_call.1} parent=1 // pred_check
      _
    $region27: #{tpu_custom_call.1} parent=1 // pred_check_branch
      %26 = sbr.rel (0) target = $region29
    $region28: #{tpu_custom_call.1} parent=1 // pred_region
      _
    $region29: #{tpu_custom_call.1} parent=1 // pred_fallthru
      _
    %v28 = vld [vmem:[%s0] sm:$0xff]
    %v29 = vld [vmem:[%s1] sm:$0xf]
    %v30 = vld [vmem:[%s2] sm:$0x3]
    %32 = vset.pattern.permute.xlu0 0
    %33 = vperm.xlu0 %32, %v28
    %v34 = vpop.permute.xlu0 %33
    %v37 = vlaneseq
    %v38 = vshrl.u32 %v37, 7
    %v39 = vsub.s32 0, %v38
    %v40 = vrot.slane %v29, %v39
    %v41 = vlaneseq
    %v42 = vshrl.u32 %v41, 7
    %v43 = vsub.s32 2, %v42
    %v44 = vrot.slane %v29, %v43
    %v47 = vlaneseq
    %v48 = vshrl.u32 %v47, 7
    %v49 = vsub.s32 0, %v48
    %v50 = vrot.slane %v40, %v49
    %v51 = vlaneseq
    %v52 = vshrl.u32 %v51, 7
    %v53 = vsub.s32 0, %v52
    %v54 = vrot.slane %v44, %v53
    %v55 = vmul.f32 %v34, %v50
    %v56 = vmul.f32 %v34, %v54
    %v58 = vlaneseq
    %v59 = vshrl.u32 %v58, 7
    %v60 = vsub.s32 0, %v59
    %v61 = vrot.slane %v30, %v60
    %v62 = vlaneseq
    %v63 = vshrl.u32 %v62, 7
    %v64 = vsub.s32 1, %v63
    %v65 = vrot.slane %v30, %v64
    %v68 = vadd.f32 %v61, %v55
    %v69 = vadd.f32 %v65, %v56
    %70 = vset.pattern.permute.xlu0 1
    %71 = vperm.xlu0 %70, %v28
    %v72 = vpop.permute.xlu0 %71
    %v74 = vlaneseq
    %v75 = vshrl.u32 %v74, 7
    %v76 = vsub.s32 1, %v75
    %v77 = vrot.slane %v29, %v76
    %v78 = vlaneseq
    %v79 = vshrl.u32 %v78, 7
    %v80 = vsub.s32 3, %v79
    %v81 = vrot.slane %v29, %v80
    %v84 = vlaneseq
    %v85 = vshrl.u32 %v84, 7
    %v86 = vsub.s32 1, %v85
    %v87 = vrot.slane %v77, %v86
    %v88 = vlaneseq
    %v89 = vshrl.u32 %v88, 7
    %v90 = vsub.s32 1, %v89
    %v91 = vrot.slane %v81, %v90
    %v92 = vmul.f32 %v72, %v87
    %v93 = vmul.f32 %v72, %v91
    %v94 = vadd.f32 %v68, %v92
    %v95 = vadd.f32 %v69, %v93
    %v96 = vmax.f32 %v94, 0.0
    %v97 = vmax.f32 %v95, 0.0
    %v98 = vpack.c.bf16 %v96, %v96
    %v99 = vpack.c.bf16 %v97, %v97
    %v100 = vld [vmem:[%s3] sm:$0xff]
    %v101 = vld [vmem:[%s3 + $0x8] sm:$0xff]
    %v102 = vld [vmem:[%s3 + $0x10] sm:$0xff]
    %v103 = vld [vmem:[%s3 + $0x18] sm:$0xff]
    %v104 = vld [vmem:[%s3 + $0x20] sm:$0xff]
    %v105 = vld [vmem:[%s3 + $0x28] sm:$0xff]
    %v106 = vld [vmem:[%s3 + $0x30] sm:$0xff]
    %v107 = vld [vmem:[%s3 + $0x38] sm:$0xff]
    %v108 = vld [vmem:[%s3 + $0x40] sm:$0xff]
    %v109 = vld [vmem:[%s3 + $0x48] sm:$0xff]
    %v110 = vld [vmem:[%s3 + $0x50] sm:$0xff]
    %v111 = vld [vmem:[%s3 + $0x58] sm:$0xff]
    %v112 = vld [vmem:[%s3 + $0x60] sm:$0xff]
    %v113 = vld [vmem:[%s3 + $0x68] sm:$0xff]
    %v114 = vld [vmem:[%s3 + $0x70] sm:$0xff]
    %v115 = vld [vmem:[%s3 + $0x78] sm:$0xff]
    %v116 = vld [vmem:[%s3 + $0x80] sm:$0xff]
    %v117 = vld [vmem:[%s3 + $0x88] sm:$0xff]
    %v118 = vld [vmem:[%s3 + $0x90] sm:$0xff]
    %v119 = vld [vmem:[%s3 + $0x98] sm:$0xff]
    %v120 = vld [vmem:[%s3 + $0xa0] sm:$0xff]
    %v121 = vld [vmem:[%s3 + $0xa8] sm:$0xff]
    %v122 = vld [vmem:[%s3 + $0xb0] sm:$0xff]
    %v123 = vld [vmem:[%s3 + $0xb8] sm:$0xff]
    %v124 = vld [vmem:[%s3 + $0xc0] sm:$0xff]
    %v125 = vld [vmem:[%s3 + $0xc8] sm:$0xff]
    %v126 = vld [vmem:[%s3 + $0xd0] sm:$0xff]
    %v127 = vld [vmem:[%s3 + $0xd8] sm:$0xff]
    %v128 = vld [vmem:[%s3 + $0xe0] sm:$0xff]
    %v129 = vld [vmem:[%s3 + $0xe8] sm:$0xff]
    %v130 = vld [vmem:[%s3 + $0xf0] sm:$0xff]
    %v131 = vld [vmem:[%s3 + $0xf8] sm:$0xff]
    %v132 = vld [vmem:[%s3 + $0x100] sm:$0xff]
    %v133 = vld [vmem:[%s3 + $0x108] sm:$0xff]
    %v134 = vld [vmem:[%s3 + $0x110] sm:$0xff]
    %v135 = vld [vmem:[%s3 + $0x118] sm:$0xff]
    %v136 = vld [vmem:[%s3 + $0x120] sm:$0xff]
    %v137 = vld [vmem:[%s3 + $0x128] sm:$0xff]
    %v138 = vld [vmem:[%s3 + $0x130] sm:$0xff]
    %v139 = vld [vmem:[%s3 + $0x138] sm:$0xff]
    %v140 = vld [vmem:[%s3 + $0x140] sm:$0xff]
    %v141 = vld [vmem:[%s3 + $0x148] sm:$0xff]
    %v142 = vld [vmem:[%s3 + $0x150] sm:$0xff]
    %v143 = vld [vmem:[%s3 + $0x158] sm:$0xff]
    %v144 = vld [vmem:[%s3 + $0x160] sm:$0xff]
    %v145 = vld [vmem:[%s3 + $0x168] sm:$0xff]
    %v146 = vld [vmem:[%s3 + $0x170] sm:$0xff]
    %v147 = vld [vmem:[%s3 + $0x178] sm:$0xff]
    %v148 = vld [vmem:[%s3 + $0x180] sm:$0xff]
    %v149 = vld [vmem:[%s3 + $0x188] sm:$0xff]
    %v150 = vld [vmem:[%s3 + $0x190] sm:$0xff]
    %v151 = vld [vmem:[%s3 + $0x198] sm:$0xff]
    %v152 = vld [vmem:[%s3 + $0x1a0] sm:$0xff]
    %v153 = vld [vmem:[%s3 + $0x1a8] sm:$0xff]
    %v154 = vld [vmem:[%s3 + $0x1b0] sm:$0xff]
    %v155 = vld [vmem:[%s3 + $0x1b8] sm:$0xff]
    %v156 = vld [vmem:[%s3 + $0x1c0] sm:$0xff]
    %v157 = vld [vmem:[%s3 + $0x1c8] sm:$0xff]
    %v158 = vld [vmem:[%s3 + $0x1d0] sm:$0xff]
    %v159 = vld [vmem:[%s3 + $0x1d8] sm:$0xff]
    %v160 = vld [vmem:[%s3 + $0x1e0] sm:$0xff]
    %v161 = vld [vmem:[%s3 + $0x1e8] sm:$0xff]
    %v162 = vld [vmem:[%s3 + $0x1f0] sm:$0xff]
    %v163 = vld [vmem:[%s3 + $0x1f8] sm:$0xff]
    %v164 = vld [vmem:[%s4] sm:$0xf]
    %v166 = vlaneseq
    %v167 = vshrl.u32 %v166, 7
    %v168 = vsub.s32 0, %v167
    %v169 = vrot.slane %v164, %v168
    %v170 = vlaneseq
    %v171 = vshrl.u32 %v170, 7
    %v172 = vsub.s32 1, %v171
    %v173 = vrot.slane %v164, %v172
    %v174 = vlaneseq
    %v175 = vshrl.u32 %v174, 7
    %v176 = vsub.s32 2, %v175
    %v177 = vrot.slane %v164, %v176
    %v178 = vlaneseq
    %v179 = vshrl.u32 %v178, 7
    %v180 = vsub.s32 3, %v179
    %v181 = vrot.slane %v164, %v180
    %v250 = vunpack.c.l.b16 %v100
    %v251 = vunpack.c.h.b16 %v100
    %v252 = vunpack.c.l.b16 %v101
    %v253 = vunpack.c.h.b16 %v101
    %v254 = vunpack.c.l.b16 %v102
    %v255 = vunpack.c.h.b16 %v102
    %v256 = vunpack.c.l.b16 %v103
    %v257 = vunpack.c.h.b16 %v103
    %v258 = vunpack.c.l.b16 %v104
    %v259 = vunpack.c.h.b16 %v104
    %v260 = vunpack.c.l.b16 %v105
    %v261 = vunpack.c.h.b16 %v105
    %v262 = vunpack.c.l.b16 %v106
    %v263 = vunpack.c.h.b16 %v106
    %v264 = vunpack.c.l.b16 %v107
    %v265 = vunpack.c.h.b16 %v107
    %v266 = vunpack.c.l.b16 %v108
    %v267 = vunpack.c.h.b16 %v108
    %v268 = vunpack.c.l.b16 %v109
    %v269 = vunpack.c.h.b16 %v109
    %v270 = vunpack.c.l.b16 %v110
    %v271 = vunpack.c.h.b16 %v110
    %v272 = vunpack.c.l.b16 %v111
    %v273 = vunpack.c.h.b16 %v111
    %v274 = vunpack.c.l.b16 %v112
    %v275 = vunpack.c.h.b16 %v112
    %v276 = vunpack.c.l.b16 %v113
    %v277 = vunpack.c.h.b16 %v113
    %v278 = vunpack.c.l.b16 %v114
    %v279 = vunpack.c.h.b16 %v114
    %v280 = vunpack.c.l.b16 %v115
    %v281 = vunpack.c.h.b16 %v115
    %v282 = vunpack.c.l.b16 %v116
    %v283 = vunpack.c.h.b16 %v116
    %v284 = vunpack.c.l.b16 %v117
    %v285 = vunpack.c.h.b16 %v117
    %v286 = vunpack.c.l.b16 %v118
    %v287 = vunpack.c.h.b16 %v118
    %v288 = vunpack.c.l.b16 %v119
    %v289 = vunpack.c.h.b16 %v119
    %v290 = vunpack.c.l.b16 %v120
    %v291 = vunpack.c.h.b16 %v120
    %v292 = vunpack.c.l.b16 %v121
    %v293 = vunpack.c.h.b16 %v121
    %v294 = vunpack.c.l.b16 %v122
    %v295 = vunpack.c.h.b16 %v122
    %v296 = vunpack.c.l.b16 %v123
    %v297 = vunpack.c.h.b16 %v123
    %v298 = vunpack.c.l.b16 %v124
    %v299 = vunpack.c.h.b16 %v124
    %v300 = vunpack.c.l.b16 %v125
    %v301 = vunpack.c.h.b16 %v125
    %v302 = vunpack.c.l.b16 %v126
    %v303 = vunpack.c.h.b16 %v126
    %v304 = vunpack.c.l.b16 %v127
    %v305 = vunpack.c.h.b16 %v127
    %v306 = vunpack.c.l.b16 %v128
    %v307 = vunpack.c.h.b16 %v128
    %v308 = vunpack.c.l.b16 %v129
    %v309 = vunpack.c.h.b16 %v129
    %v310 = vunpack.c.l.b16 %v130
    %v311 = vunpack.c.h.b16 %v130
    %v312 = vunpack.c.l.b16 %v131
    %v313 = vunpack.c.h.b16 %v131
    %v314 = vunpack.c.l.b16 %v132
    %v315 = vunpack.c.h.b16 %v132
    %v316 = vunpack.c.l.b16 %v133
    %v317 = vunpack.c.h.b16 %v133
    %v318 = vunpack.c.l.b16 %v134
    %v319 = vunpack.c.h.b16 %v134
    %v320 = vunpack.c.l.b16 %v135
    %v321 = vunpack.c.h.b16 %v135
    %v322 = vunpack.c.l.b16 %v136
    %v323 = vunpack.c.h.b16 %v136
    %v324 = vunpack.c.l.b16 %v137
    %v325 = vunpack.c.h.b16 %v137
    %v326 = vunpack.c.l.b16 %v138
    %v327 = vunpack.c.h.b16 %v138
    %v328 = vunpack.c.l.b16 %v139
    %v329 = vunpack.c.h.b16 %v139
    %v330 = vunpack.c.l.b16 %v140
    %v331 = vunpack.c.h.b16 %v140
    %v332 = vunpack.c.l.b16 %v141
    %v333 = vunpack.c.h.b16 %v141
    %v334 = vunpack.c.l.b16 %v142
    %v335 = vunpack.c.h.b16 %v142
    %v336 = vunpack.c.l.b16 %v143
    %v337 = vunpack.c.h.b16 %v143
    %v338 = vunpack.c.l.b16 %v144
    %v339 = vunpack.c.h.b16 %v144
    %v340 = vunpack.c.l.b16 %v145
    %v341 = vunpack.c.h.b16 %v145
    %v342 = vunpack.c.l.b16 %v146
    %v343 = vunpack.c.h.b16 %v146
    %v344 = vunpack.c.l.b16 %v147
    %v345 = vunpack.c.h.b16 %v147
    %v346 = vunpack.c.l.b16 %v148
    %v347 = vunpack.c.h.b16 %v148
    %v348 = vunpack.c.l.b16 %v149
    %v349 = vunpack.c.h.b16 %v149
    %v350 = vunpack.c.l.b16 %v150
    %v351 = vunpack.c.h.b16 %v150
    %v352 = vunpack.c.l.b16 %v151
    %v353 = vunpack.c.h.b16 %v151
    %v354 = vunpack.c.l.b16 %v152
    %v355 = vunpack.c.h.b16 %v152
    %v356 = vunpack.c.l.b16 %v153
    %v357 = vunpack.c.h.b16 %v153
    %v358 = vunpack.c.l.b16 %v154
    %v359 = vunpack.c.h.b16 %v154
    %v360 = vunpack.c.l.b16 %v155
    %v361 = vunpack.c.h.b16 %v155
    %v362 = vunpack.c.l.b16 %v156
    %v363 = vunpack.c.h.b16 %v156
    %v364 = vunpack.c.l.b16 %v157
    %v365 = vunpack.c.h.b16 %v157
    %v366 = vunpack.c.l.b16 %v158
    %v367 = vunpack.c.h.b16 %v158
    %v368 = vunpack.c.l.b16 %v159
    %v369 = vunpack.c.h.b16 %v159
    %v370 = vunpack.c.l.b16 %v160
    %v371 = vunpack.c.h.b16 %v160
    %v372 = vunpack.c.l.b16 %v161
    %v373 = vunpack.c.h.b16 %v161
    %v374 = vunpack.c.l.b16 %v162
    %v375 = vunpack.c.h.b16 %v162
    %v376 = vunpack.c.l.b16 %v163
    %v377 = vunpack.c.h.b16 %v163
    %v378 = vpack.c.b16 %v254, %v250
    %v379 = vpack.c.b16 %v255, %v251
    %v380 = vpack.c.b16 %v256, %v252
    %v381 = vpack.c.b16 %v257, %v253
    %v382 = vpack.c.b16 %v262, %v258
    %v383 = vpack.c.b16 %v263, %v259
    %v384 = vpack.c.b16 %v264, %v260
    %v385 = vpack.c.b16 %v265, %v261
    %v386 = vpack.c.b16 %v270, %v266
    %v387 = vpack.c.b16 %v271, %v267
    %v388 = vpack.c.b16 %v272, %v268
    %v389 = vpack.c.b16 %v273, %v269
    %v390 = vpack.c.b16 %v278, %v274
    %v391 = vpack.c.b16 %v279, %v275
    %v392 = vpack.c.b16 %v280, %v276
    %v393 = vpack.c.b16 %v281, %v277
    %v394 = vpack.c.b16 %v286, %v282
    %v395 = vpack.c.b16 %v287, %v283
    %v396 = vpack.c.b16 %v288, %v284
    %v397 = vpack.c.b16 %v289, %v285
    %v398 = vpack.c.b16 %v294, %v290
    %v399 = vpack.c.b16 %v295, %v291
    %v400 = vpack.c.b16 %v296, %v292
    %v401 = vpack.c.b16 %v297, %v293
    %v402 = vpack.c.b16 %v302, %v298
    %v403 = vpack.c.b16 %v303, %v299
    %v404 = vpack.c.b16 %v304, %v300
    %v405 = vpack.c.b16 %v305, %v301
    %v406 = vpack.c.b16 %v310, %v306
    %v407 = vpack.c.b16 %v311, %v307
    %v408 = vpack.c.b16 %v312, %v308
    %v409 = vpack.c.b16 %v313, %v309
    %v410 = vpack.c.b16 %v318, %v314
    %v411 = vpack.c.b16 %v319, %v315
    %v412 = vpack.c.b16 %v320, %v316
    %v413 = vpack.c.b16 %v321, %v317
    %v414 = vpack.c.b16 %v326, %v322
    %v415 = vpack.c.b16 %v327, %v323
    %v416 = vpack.c.b16 %v328, %v324
    %v417 = vpack.c.b16 %v329, %v325
    %v418 = vpack.c.b16 %v334, %v330
    %v419 = vpack.c.b16 %v335, %v331
    %v420 = vpack.c.b16 %v336, %v332
    %v421 = vpack.c.b16 %v337, %v333
    %v422 = vpack.c.b16 %v342, %v338
    %v423 = vpack.c.b16 %v343, %v339
    %v424 = vpack.c.b16 %v344, %v340
    %v425 = vpack.c.b16 %v345, %v341
    %v426 = vpack.c.b16 %v350, %v346
    %v427 = vpack.c.b16 %v351, %v347
    %v428 = vpack.c.b16 %v352, %v348
    %v429 = vpack.c.b16 %v353, %v349
    %v430 = vpack.c.b16 %v358, %v354
    %v431 = vpack.c.b16 %v359, %v355
    %v432 = vpack.c.b16 %v360, %v356
    %v433 = vpack.c.b16 %v361, %v357
    %v434 = vpack.c.b16 %v366, %v362
    %v435 = vpack.c.b16 %v367, %v363
    %v436 = vpack.c.b16 %v368, %v364
    %v437 = vpack.c.b16 %v369, %v365
    %v438 = vpack.c.b16 %v374, %v370
    %v439 = vpack.c.b16 %v375, %v371
    %v440 = vpack.c.b16 %v376, %v372
    %v441 = vpack.c.b16 %v377, %v373
    %506 = vmatprep.subr.bf16.mxu0 %v407
    %507 = vmatpush1.bf16.msra.mxu0 %v406
    %508 = vmatprep.subr.bf16.mxu0 %v403
    %509 = vmatpush1.bf16.msra.mxu0 %v402
    %510 = vmatprep.subr.bf16.mxu0 %v399
    %511 = vmatpush1.bf16.msra.mxu0 %v398
    %512 = vmatprep.subr.bf16.mxu0 %v395
    %513 = vmatpush1.bf16.msra.mxu0 %v394
    %514 = vmatprep.subr.bf16.mxu0 %v391
    %515 = vmatpush1.bf16.msra.mxu0 %v390
    %516 = vmatprep.subr.bf16.mxu0 %v387
    %517 = vmatpush1.bf16.msra.mxu0 %v386
    %518 = vmatprep.subr.bf16.mxu0 %v383
    %519 = vmatpush1.bf16.msra.mxu0 %v382
    %520 = vmatprep.subr.bf16.mxu0 %v379
    %521 = vmatpush1.bf16.msra.mxu0 %v378
    %522 = vmatprep.subr.bf16.mxu0 %v439
    %523 = vmatpush2.bf16.msra.mxu0 %v438
    %524 = vmatprep.subr.bf16.mxu0 %v435
    %525 = vmatpush2.bf16.msra.mxu0 %v434
    %526 = vmatprep.subr.bf16.mxu0 %v431
    %527 = vmatpush2.bf16.msra.mxu0 %v430
    %528 = vmatprep.subr.bf16.mxu0 %v427
    %529 = vmatpush2.bf16.msra.mxu0 %v426
    %530 = vmatprep.subr.bf16.mxu0 %v423
    %531 = vmatpush2.bf16.msra.mxu0 %v422
    %532 = vmatprep.subr.bf16.mxu0 %v419
    %533 = vmatpush2.bf16.msra.mxu0 %v418
    %534 = vmatprep.subr.bf16.mxu0 %v415
    %535 = vmatpush2.bf16.msra.mxu0 %v414
    %536 = vmatprep.subr.bf16.mxu0 %v411
    %537 = vmatpush2.bf16.msra.mxu0 %v410
    %538 = vmatprep.mubr.bf16.mxu0 %v99
    %539 = vmatmul.mubr.bf16.gmra.mxu0 %v98
    %v540 = vpop.f32.mrf.mxu0
    %v541 = vadd.f32 %v169, %v540
    %v542 = vpop.f32.mrf.mxu0
    %v543 = vadd.f32 %v173, %v542
    %v544 = vpop.f32.mrf.mxu0
    %v545 = vpop.f32.mrf.mxu0
    %546 = vdwg.mxu0
    %547 = vmatprep.subr.bf16.mxu0 %v409
    %548 = vmatpush1.bf16.msra.mxu0 %v408
    %549 = vmatprep.subr.bf16.mxu0 %v405
    %550 = vmatpush1.bf16.msra.mxu0 %v404
    %551 = vmatprep.subr.bf16.mxu0 %v401
    %552 = vmatpush1.bf16.msra.mxu0 %v400
    %553 = vmatprep.subr.bf16.mxu0 %v397
    %554 = vmatpush1.bf16.msra.mxu0 %v396
    %555 = vmatprep.subr.bf16.mxu0 %v393
    %556 = vmatpush1.bf16.msra.mxu0 %v392
    %557 = vmatprep.subr.bf16.mxu0 %v389
    %558 = vmatpush1.bf16.msra.mxu0 %v388
    %559 = vmatprep.subr.bf16.mxu0 %v385
    %560 = vmatpush1.bf16.msra.mxu0 %v384
    %561 = vmatprep.subr.bf16.mxu0 %v381
    %562 = vmatpush1.bf16.msra.mxu0 %v380
    %563 = vmatprep.subr.bf16.mxu0 %v441
    %564 = vmatpush2.bf16.msra.mxu0 %v440
    %565 = vmatprep.subr.bf16.mxu0 %v437
    %566 = vmatpush2.bf16.msra.mxu0 %v436
    %567 = vmatprep.subr.bf16.mxu0 %v433
    %568 = vmatpush2.bf16.msra.mxu0 %v432
    %569 = vmatprep.subr.bf16.mxu0 %v429
    %570 = vmatpush2.bf16.msra.mxu0 %v428
    %571 = vmatprep.subr.bf16.mxu0 %v425
    %572 = vmatpush2.bf16.msra.mxu0 %v424
    %573 = vmatprep.subr.bf16.mxu0 %v421
    %574 = vmatpush2.bf16.msra.mxu0 %v420
    %575 = vmatprep.subr.bf16.mxu0 %v417
    %576 = vmatpush2.bf16.msra.mxu0 %v416
    %577 = vmatprep.subr.bf16.mxu0 %v413
    %578 = vmatpush2.bf16.msra.mxu0 %v412
    %579 = vmatprep.mubr.bf16.mxu0 %v99
    %580 = vmatmul.mubr.bf16.gmra.mxu0 %v98
    %v581 = vpop.f32.mrf.mxu0
    %v582 = vadd.f32 %v177, %v581
    %v583 = vpop.f32.mrf.mxu0
    %v584 = vadd.f32 %v181, %v583
    %v585 = vpop.f32.mrf.mxu0
    %v586 = vpop.f32.mrf.mxu0
    %587 = vdwg.mxu0
    %v588 = vmax.f32 %v541, 0.0
    %v589 = vmax.f32 %v543, 0.0
    %v590 = vmax.f32 %v582, 0.0
    %v591 = vmax.f32 %v584, 0.0
    %v592 = vpack.c.bf16 %v588, %v588
    %v593 = vpack.c.bf16 %v589, %v589
    %v594 = vpack.c.bf16 %v590, %v590
    %v595 = vpack.c.bf16 %v591, %v591
    %v596 = vld [vmem:[%s5] sm:$0xff]
    %v597 = vld [vmem:[%s5 + $0x8] sm:$0xff]
    %v598 = vld [vmem:[%s5 + $0x10] sm:$0xff]
    %v599 = vld [vmem:[%s5 + $0x18] sm:$0xf]
    %v600 = vld [vmem:[%s5 + $0x1c] sm:$0xff]
    %v601 = vld [vmem:[%s5 + $0x24] sm:$0xff]
    %v602 = vld [vmem:[%s5 + $0x2c] sm:$0xff]
    %v603 = vld [vmem:[%s5 + $0x34] sm:$0xf]
    %v604 = vld [vmem:[%s5 + $0x38] sm:$0xff]
    %v605 = vld [vmem:[%s5 + $0x40] sm:$0xff]
    %v606 = vld [vmem:[%s5 + $0x48] sm:$0xff]
    %v607 = vld [vmem:[%s5 + $0x50] sm:$0xf]
    %v608 = vld [vmem:[%s5 + $0x54] sm:$0xff]
    %v609 = vld [vmem:[%s5 + $0x5c] sm:$0xff]
    %v610 = vld [vmem:[%s5 + $0x64] sm:$0xff]
    %v611 = vld [vmem:[%s5 + $0x6c] sm:$0xf]
    %v612 = vld [vmem:[%s5 + $0x70] sm:$0xff]
    %v613 = vld [vmem:[%s5 + $0x78] sm:$0xff]
    %v614 = vld [vmem:[%s5 + $0x80] sm:$0xff]
    %v615 = vld [vmem:[%s5 + $0x88] sm:$0xf]
    %v616 = vld [vmem:[%s5 + $0x8c] sm:$0xff]
    %v617 = vld [vmem:[%s5 + $0x94] sm:$0xff]
    %v618 = vld [vmem:[%s5 + $0x9c] sm:$0xff]
    %v619 = vld [vmem:[%s5 + $0xa4] sm:$0xf]
    %v620 = vld [vmem:[%s5 + $0xa8] sm:$0xff]
    %v621 = vld [vmem:[%s5 + $0xb0] sm:$0xff]
    %v622 = vld [vmem:[%s5 + $0xb8] sm:$0xff]
    %v623 = vld [vmem:[%s5 + $0xc0] sm:$0xf]
    %v624 = vld [vmem:[%s5 + $0xc4] sm:$0xff]
    %v625 = vld [vmem:[%s5 + $0xcc] sm:$0xff]
    %v626 = vld [vmem:[%s5 + $0xd4] sm:$0xff]
    %v627 = vld [vmem:[%s5 + $0xdc] sm:$0xf]
    %v628 = vld [vmem:[%s5 + $0xe0] sm:$0xff]
    %v629 = vld [vmem:[%s5 + $0xe8] sm:$0xff]
    %v630 = vld [vmem:[%s5 + $0xf0] sm:$0xff]
    %v631 = vld [vmem:[%s5 + $0xf8] sm:$0xf]
    %v632 = vld [vmem:[%s5 + $0xfc] sm:$0xff]
    %v633 = vld [vmem:[%s5 + $0x104] sm:$0xff]
    %v634 = vld [vmem:[%s5 + $0x10c] sm:$0xff]
    %v635 = vld [vmem:[%s5 + $0x114] sm:$0xf]
    %v636 = vld [vmem:[%s5 + $0x118] sm:$0xff]
    %v637 = vld [vmem:[%s5 + $0x120] sm:$0xff]
    %v638 = vld [vmem:[%s5 + $0x128] sm:$0xff]
    %v639 = vld [vmem:[%s5 + $0x130] sm:$0xf]
    %v640 = vld [vmem:[%s5 + $0x134] sm:$0xff]
    %v641 = vld [vmem:[%s5 + $0x13c] sm:$0xff]
    %v642 = vld [vmem:[%s5 + $0x144] sm:$0xff]
    %v643 = vld [vmem:[%s5 + $0x14c] sm:$0xf]
    %v644 = vld [vmem:[%s5 + $0x150] sm:$0xff]
    %v645 = vld [vmem:[%s5 + $0x158] sm:$0xff]
    %v646 = vld [vmem:[%s5 + $0x160] sm:$0xff]
    %v647 = vld [vmem:[%s5 + $0x168] sm:$0xf]
    %v648 = vld [vmem:[%s5 + $0x16c] sm:$0xff]
    %v649 = vld [vmem:[%s5 + $0x174] sm:$0xff]
    %v650 = vld [vmem:[%s5 + $0x17c] sm:$0xff]
    %v651 = vld [vmem:[%s5 + $0x184] sm:$0xf]
    %v652 = vld [vmem:[%s5 + $0x188] sm:$0xff]
    %v653 = vld [vmem:[%s5 + $0x190] sm:$0xff]
    %v654 = vld [vmem:[%s5 + $0x198] sm:$0xff]
    %v655 = vld [vmem:[%s5 + $0x1a0] sm:$0xf]
    %v656 = vld [vmem:[%s5 + $0x1a4] sm:$0xff]
    %v657 = vld [vmem:[%s5 + $0x1ac] sm:$0xff]
    %v658 = vld [vmem:[%s5 + $0x1b4] sm:$0xff]
    %v659 = vld [vmem:[%s5 + $0x1bc] sm:$0xf]
    %v660 = vld [vmem:[%s5 + $0x1c0] sm:$0xff]
    %v661 = vld [vmem:[%s5 + $0x1c8] sm:$0xff]
    %v662 = vld [vmem:[%s5 + $0x1d0] sm:$0xff]
    %v663 = vld [vmem:[%s5 + $0x1d8] sm:$0xf]
    %v664 = vld [vmem:[%s5 + $0x1dc] sm:$0xff]
    %v665 = vld [vmem:[%s5 + $0x1e4] sm:$0xff]
    %v666 = vld [vmem:[%s5 + $0x1ec] sm:$0xff]
    %v667 = vld [vmem:[%s5 + $0x1f4] sm:$0xf]
    %v668 = vld [vmem:[%s5 + $0x1f8] sm:$0xff]
    %v669 = vld [vmem:[%s5 + $0x200] sm:$0xff]
    %v670 = vld [vmem:[%s5 + $0x208] sm:$0xff]
    %v671 = vld [vmem:[%s5 + $0x210] sm:$0xf]
    %v672 = vld [vmem:[%s5 + $0x214] sm:$0xff]
    %v673 = vld [vmem:[%s5 + $0x21c] sm:$0xff]
    %v674 = vld [vmem:[%s5 + $0x224] sm:$0xff]
    %v675 = vld [vmem:[%s5 + $0x22c] sm:$0xf]
    %v676 = vld [vmem:[%s5 + $0x230] sm:$0xff]
    %v677 = vld [vmem:[%s5 + $0x238] sm:$0xff]
    %v678 = vld [vmem:[%s5 + $0x240] sm:$0xff]
    %v679 = vld [vmem:[%s5 + $0x248] sm:$0xf]
    %v680 = vld [vmem:[%s5 + $0x24c] sm:$0xff]
    %v681 = vld [vmem:[%s5 + $0x254] sm:$0xff]
    %v682 = vld [vmem:[%s5 + $0x25c] sm:$0xff]
    %v683 = vld [vmem:[%s5 + $0x264] sm:$0xf]
    %v684 = vld [vmem:[%s5 + $0x268] sm:$0xff]
    %v685 = vld [vmem:[%s5 + $0x270] sm:$0xff]
    %v686 = vld [vmem:[%s5 + $0x278] sm:$0xff]
    %v687 = vld [vmem:[%s5 + $0x280] sm:$0xf]
    %v688 = vld [vmem:[%s5 + $0x284] sm:$0xff]
    %v689 = vld [vmem:[%s5 + $0x28c] sm:$0xff]
    %v690 = vld [vmem:[%s5 + $0x294] sm:$0xff]
    %v691 = vld [vmem:[%s5 + $0x29c] sm:$0xf]
    %v692 = vld [vmem:[%s5 + $0x2a0] sm:$0xff]
    %v693 = vld [vmem:[%s5 + $0x2a8] sm:$0xff]
    %v694 = vld [vmem:[%s5 + $0x2b0] sm:$0xff]
    %v695 = vld [vmem:[%s5 + $0x2b8] sm:$0xf]
    %v696 = vld [vmem:[%s5 + $0x2bc] sm:$0xff]
    %v697 = vld [vmem:[%s5 + $0x2c4] sm:$0xff]
    %v698 = vld [vmem:[%s5 + $0x2cc] sm:$0xff]
    %v699 = vld [vmem:[%s5 + $0x2d4] sm:$0xf]
    %v700 = vld [vmem:[%s5 + $0x2d8] sm:$0xff]
    %v701 = vld [vmem:[%s5 + $0x2e0] sm:$0xff]
    %v702 = vld [vmem:[%s5 + $0x2e8] sm:$0xff]
    %v703 = vld [vmem:[%s5 + $0x2f0] sm:$0xf]
    %v704 = vld [vmem:[%s5 + $0x2f4] sm:$0xff]
    %v705 = vld [vmem:[%s5 + $0x2fc] sm:$0xff]
    %v706 = vld [vmem:[%s5 + $0x304] sm:$0xff]
    %v707 = vld [vmem:[%s5 + $0x30c] sm:$0xf]
    %v708 = vld [vmem:[%s5 + $0x310] sm:$0xff]
    %v709 = vld [vmem:[%s5 + $0x318] sm:$0xff]
    %v710 = vld [vmem:[%s5 + $0x320] sm:$0xff]
    %v711 = vld [vmem:[%s5 + $0x328] sm:$0xf]
    %v712 = vld [vmem:[%s5 + $0x32c] sm:$0xff]
    %v713 = vld [vmem:[%s5 + $0x334] sm:$0xff]
    %v714 = vld [vmem:[%s5 + $0x33c] sm:$0xff]
    %v715 = vld [vmem:[%s5 + $0x344] sm:$0xf]
    %v716 = vld [vmem:[%s5 + $0x348] sm:$0xff]
    %v717 = vld [vmem:[%s5 + $0x350] sm:$0xff]
    %v718 = vld [vmem:[%s5 + $0x358] sm:$0xff]
    %v719 = vld [vmem:[%s5 + $0x360] sm:$0xf]
    %v720 = vld [vmem:[%s5 + $0x364] sm:$0xff]
    %v721 = vld [vmem:[%s5 + $0x36c] sm:$0xff]
    %v722 = vld [vmem:[%s5 + $0x374] sm:$0xff]
    %v723 = vld [vmem:[%s5 + $0x37c] sm:$0xf]
    %v724 = vld [vmem:[%s5 + $0x380] sm:$0xff]
    %v725 = vld [vmem:[%s5 + $0x388] sm:$0xff]
    %v726 = vld [vmem:[%s5 + $0x390] sm:$0xff]
    %v727 = vld [vmem:[%s5 + $0x398] sm:$0xf]
    %v728 = vld [vmem:[%s5 + $0x39c] sm:$0xff]
    %v729 = vld [vmem:[%s5 + $0x3a4] sm:$0xff]
    %v730 = vld [vmem:[%s5 + $0x3ac] sm:$0xff]
    %v731 = vld [vmem:[%s5 + $0x3b4] sm:$0xf]
    %v732 = vld [vmem:[%s5 + $0x3b8] sm:$0xff]
    %v733 = vld [vmem:[%s5 + $0x3c0] sm:$0xff]
    %v734 = vld [vmem:[%s5 + $0x3c8] sm:$0xff]
    %v735 = vld [vmem:[%s5 + $0x3d0] sm:$0xf]
    %v736 = vld [vmem:[%s5 + $0x3d4] sm:$0xff]
    %v737 = vld [vmem:[%s5 + $0x3dc] sm:$0xff]
    %v738 = vld [vmem:[%s5 + $0x3e4] sm:$0xff]
    %v739 = vld [vmem:[%s5 + $0x3ec] sm:$0xf]
    %v740 = vld [vmem:[%s5 + $0x3f0] sm:$0xff]
    %v741 = vld [vmem:[%s5 + $0x3f8] sm:$0xff]
    %v742 = vld [vmem:[%s5 + $0x400] sm:$0xff]
    %v743 = vld [vmem:[%s5 + $0x408] sm:$0xf]
    %v744 = vld [vmem:[%s5 + $0x40c] sm:$0xff]
    %v745 = vld [vmem:[%s5 + $0x414] sm:$0xff]
    %v746 = vld [vmem:[%s5 + $0x41c] sm:$0xff]
    %v747 = vld [vmem:[%s5 + $0x424] sm:$0xf]
    %v748 = vld [vmem:[%s5 + $0x428] sm:$0xff]
    %v749 = vld [vmem:[%s5 + $0x430] sm:$0xff]
    %v750 = vld [vmem:[%s5 + $0x438] sm:$0xff]
    %v751 = vld [vmem:[%s5 + $0x440] sm:$0xf]
    %v752 = vld [vmem:[%s5 + $0x444] sm:$0xff]
    %v753 = vld [vmem:[%s5 + $0x44c] sm:$0xff]
    %v754 = vld [vmem:[%s5 + $0x454] sm:$0xff]
    %v755 = vld [vmem:[%s5 + $0x45c] sm:$0xf]
    %v756 = vld [vmem:[%s5 + $0x460] sm:$0xff]
    %v757 = vld [vmem:[%s5 + $0x468] sm:$0xff]
    %v758 = vld [vmem:[%s5 + $0x470] sm:$0xff]
    %v759 = vld [vmem:[%s5 + $0x478] sm:$0xf]
    %v760 = vld [vmem:[%s5 + $0x47c] sm:$0xff]
    %v761 = vld [vmem:[%s5 + $0x484] sm:$0xff]
    %v762 = vld [vmem:[%s5 + $0x48c] sm:$0xff]
    %v763 = vld [vmem:[%s5 + $0x494] sm:$0xf]
    %v764 = vld [vmem:[%s5 + $0x498] sm:$0xff]
    %v765 = vld [vmem:[%s5 + $0x4a0] sm:$0xff]
    %v766 = vld [vmem:[%s5 + $0x4a8] sm:$0xff]
    %v767 = vld [vmem:[%s5 + $0x4b0] sm:$0xf]
    %v768 = vld [vmem:[%s5 + $0x4b4] sm:$0xff]
    %v769 = vld [vmem:[%s5 + $0x4bc] sm:$0xff]
    %v770 = vld [vmem:[%s5 + $0x4c4] sm:$0xff]
    %v771 = vld [vmem:[%s5 + $0x4cc] sm:$0xf]
    %v772 = vld [vmem:[%s5 + $0x4d0] sm:$0xff]
    %v773 = vld [vmem:[%s5 + $0x4d8] sm:$0xff]
    %v774 = vld [vmem:[%s5 + $0x4e0] sm:$0xff]
    %v775 = vld [vmem:[%s5 + $0x4e8] sm:$0xf]
    %v776 = vld [vmem:[%s5 + $0x4ec] sm:$0xff]
    %v777 = vld [vmem:[%s5 + $0x4f4] sm:$0xff]
    %v778 = vld [vmem:[%s5 + $0x4fc] sm:$0xff]
    %v779 = vld [vmem:[%s5 + $0x504] sm:$0xf]
    %v780 = vld [vmem:[%s5 + $0x508] sm:$0xff]
    %v781 = vld [vmem:[%s5 + $0x510] sm:$0xff]
    %v782 = vld [vmem:[%s5 + $0x518] sm:$0xff]
    %v783 = vld [vmem:[%s5 + $0x520] sm:$0xf]
    %v784 = vld [vmem:[%s5 + $0x524] sm:$0xff]
    %v785 = vld [vmem:[%s5 + $0x52c] sm:$0xff]
    %v786 = vld [vmem:[%s5 + $0x534] sm:$0xff]
    %v787 = vld [vmem:[%s5 + $0x53c] sm:$0xf]
    %v788 = vld [vmem:[%s5 + $0x540] sm:$0xff]
    %v789 = vld [vmem:[%s5 + $0x548] sm:$0xff]
    %v790 = vld [vmem:[%s5 + $0x550] sm:$0xff]
    %v791 = vld [vmem:[%s5 + $0x558] sm:$0xf]
    %v792 = vld [vmem:[%s5 + $0x55c] sm:$0xff]
    %v793 = vld [vmem:[%s5 + $0x564] sm:$0xff]
    %v794 = vld [vmem:[%s5 + $0x56c] sm:$0xff]
    %v795 = vld [vmem:[%s5 + $0x574] sm:$0xf]
    %v796 = vld [vmem:[%s5 + $0x578] sm:$0xff]
    %v797 = vld [vmem:[%s5 + $0x580] sm:$0xff]
    %v798 = vld [vmem:[%s5 + $0x588] sm:$0xff]
    %v799 = vld [vmem:[%s5 + $0x590] sm:$0xf]
    %v800 = vld [vmem:[%s5 + $0x594] sm:$0xff]
    %v801 = vld [vmem:[%s5 + $0x59c] sm:$0xff]
    %v802 = vld [vmem:[%s5 + $0x5a4] sm:$0xff]
    %v803 = vld [vmem:[%s5 + $0x5ac] sm:$0xf]
    %v804 = vld [vmem:[%s5 + $0x5b0] sm:$0xff]
    %v805 = vld [vmem:[%s5 + $0x5b8] sm:$0xff]
    %v806 = vld [vmem:[%s5 + $0x5c0] sm:$0xff]
    %v807 = vld [vmem:[%s5 + $0x5c8] sm:$0xf]
    %v808 = vld [vmem:[%s5 + $0x5cc] sm:$0xff]
    %v809 = vld [vmem:[%s5 + $0x5d4] sm:$0xff]
    %v810 = vld [vmem:[%s5 + $0x5dc] sm:$0xff]
    %v811 = vld [vmem:[%s5 + $0x5e4] sm:$0xf]
    %v812 = vld [vmem:[%s5 + $0x5e8] sm:$0xff]
    %v813 = vld [vmem:[%s5 + $0x5f0] sm:$0xff]
    %v814 = vld [vmem:[%s5 + $0x5f8] sm:$0xff]
    %v815 = vld [vmem:[%s5 + $0x600] sm:$0xf]
    %v816 = vld [vmem:[%s5 + $0x604] sm:$0xff]
    %v817 = vld [vmem:[%s5 + $0x60c] sm:$0xff]
    %v818 = vld [vmem:[%s5 + $0x614] sm:$0xff]
    %v819 = vld [vmem:[%s5 + $0x61c] sm:$0xf]
    %v820 = vld [vmem:[%s5 + $0x620] sm:$0xff]
    %v821 = vld [vmem:[%s5 + $0x628] sm:$0xff]
    %v822 = vld [vmem:[%s5 + $0x630] sm:$0xff]
    %v823 = vld [vmem:[%s5 + $0x638] sm:$0xf]
    %v824 = vld [vmem:[%s5 + $0x63c] sm:$0xff]
    %v825 = vld [vmem:[%s5 + $0x644] sm:$0xff]
    %v826 = vld [vmem:[%s5 + $0x64c] sm:$0xff]
    %v827 = vld [vmem:[%s5 + $0x654] sm:$0xf]
    %v828 = vld [vmem:[%s5 + $0x658] sm:$0xff]
    %v829 = vld [vmem:[%s5 + $0x660] sm:$0xff]
    %v830 = vld [vmem:[%s5 + $0x668] sm:$0xff]
    %v831 = vld [vmem:[%s5 + $0x670] sm:$0xf]
    %v832 = vld [vmem:[%s5 + $0x674] sm:$0xff]
    %v833 = vld [vmem:[%s5 + $0x67c] sm:$0xff]
    %v834 = vld [vmem:[%s5 + $0x684] sm:$0xff]
    %v835 = vld [vmem:[%s5 + $0x68c] sm:$0xf]
    %v836 = vld [vmem:[%s5 + $0x690] sm:$0xff]
    %v837 = vld [vmem:[%s5 + $0x698] sm:$0xff]
    %v838 = vld [vmem:[%s5 + $0x6a0] sm:$0xff]
    %v839 = vld [vmem:[%s5 + $0x6a8] sm:$0xf]
    %v840 = vld [vmem:[%s5 + $0x6ac] sm:$0xff]
    %v841 = vld [vmem:[%s5 + $0x6b4] sm:$0xff]
    %v842 = vld [vmem:[%s5 + $0x6bc] sm:$0xff]
    %v843 = vld [vmem:[%s5 + $0x6c4] sm:$0xf]
    %v844 = vld [vmem:[%s5 + $0x6c8] sm:$0xff]
    %v845 = vld [vmem:[%s5 + $0x6d0] sm:$0xff]
    %v846 = vld [vmem:[%s5 + $0x6d8] sm:$0xff]
    %v847 = vld [vmem:[%s5 + $0x6e0] sm:$0xf]
    %v848 = vld [vmem:[%s5 + $0x6e4] sm:$0xff]
    %v849 = vld [vmem:[%s5 + $0x6ec] sm:$0xff]
    %v850 = vld [vmem:[%s5 + $0x6f4] sm:$0xff]
    %v851 = vld [vmem:[%s5 + $0x6fc] sm:$0xf]
    %v852 = vld [vmem:[%s6] sm:$0x7f]
    %v854 = vlaneseq
    %v855 = vshrl.u32 %v854, 7
    %v856 = vsub.s32 0, %v855
    %v857 = vrot.slane %v852, %v856
    %v858 = vlaneseq
    %v859 = vshrl.u32 %v858, 7
    %v860 = vsub.s32 1, %v859
    %v861 = vrot.slane %v852, %v860
    %v862 = vlaneseq
    %v863 = vshrl.u32 %v862, 7
    %v864 = vsub.s32 2, %v863
    %v865 = vrot.slane %v852, %v864
    %v866 = vlaneseq
    %v867 = vshrl.u32 %v866, 7
    %v868 = vsub.s32 3, %v867
    %v869 = vrot.slane %v852, %v868
    %v870 = vlaneseq
    %v871 = vshrl.u32 %v870, 7
    %v872 = vsub.s32 4, %v871
    %v873 = vrot.slane %v852, %v872
    %v874 = vlaneseq
    %v875 = vshrl.u32 %v874, 7
    %v876 = vsub.s32 5, %v875
    %v877 = vrot.slane %v852, %v876
    %v878 = vlaneseq
    %v879 = vshrl.u32 %v878, 7
    %v880 = vsub.s32 6, %v879
    %v881 = vrot.slane %v852, %v880
    %v1145 = vunpack.c.l.b16 %v596
    %v1146 = vunpack.c.h.b16 %v596
    %v1147 = vunpack.c.l.b16 %v597
    %v1148 = vunpack.c.h.b16 %v597
    %v1149 = vunpack.c.l.b16 %v598
    %v1150 = vunpack.c.h.b16 %v598
    %v1151 = vunpack.c.l.b16 %v599
    %v1152 = vunpack.c.l.b16 %v600
    %v1153 = vunpack.c.h.b16 %v600
    %v1154 = vunpack.c.l.b16 %v601
    %v1155 = vunpack.c.h.b16 %v601
    %v1156 = vunpack.c.l.b16 %v602
    %v1157 = vunpack.c.h.b16 %v602
    %v1158 = vunpack.c.l.b16 %v603
    %v1159 = vunpack.c.l.b16 %v604
    %v1160 = vunpack.c.h.b16 %v604
    %v1161 = vunpack.c.l.b16 %v605
    %v1162 = vunpack.c.h.b16 %v605
    %v1163 = vunpack.c.l.b16 %v606
    %v1164 = vunpack.c.h.b16 %v606
    %v1165 = vunpack.c.l.b16 %v607
    %v1166 = vunpack.c.l.b16 %v608
    %v1167 = vunpack.c.h.b16 %v608
    %v1168 = vunpack.c.l.b16 %v609
    %v1169 = vunpack.c.h.b16 %v609
    %v1170 = vunpack.c.l.b16 %v610
    %v1171 = vunpack.c.h.b16 %v610
    %v1172 = vunpack.c.l.b16 %v611
    %v1173 = vunpack.c.l.b16 %v612
    %v1174 = vunpack.c.h.b16 %v612
    %v1175 = vunpack.c.l.b16 %v613
    %v1176 = vunpack.c.h.b16 %v613
    %v1177 = vunpack.c.l.b16 %v614
    %v1178 = vunpack.c.h.b16 %v614
    %v1179 = vunpack.c.l.b16 %v615
    %v1180 = vunpack.c.l.b16 %v616
    %v1181 = vunpack.c.h.b16 %v616
    %v1182 = vunpack.c.l.b16 %v617
    %v1183 = vunpack.c.h.b16 %v617
    %v1184 = vunpack.c.l.b16 %v618
    %v1185 = vunpack.c.h.b16 %v618
    %v1186 = vunpack.c.l.b16 %v619
    %v1187 = vunpack.c.l.b16 %v620
    %v1188 = vunpack.c.h.b16 %v620
    %v1189 = vunpack.c.l.b16 %v621
    %v1190 = vunpack.c.h.b16 %v621
    %v1191 = vunpack.c.l.b16 %v622
    %v1192 = vunpack.c.h.b16 %v622
    %v1193 = vunpack.c.l.b16 %v623
    %v1194 = vunpack.c.l.b16 %v624
    %v1195 = vunpack.c.h.b16 %v624
    %v1196 = vunpack.c.l.b16 %v625
    %v1197 = vunpack.c.h.b16 %v625
    %v1198 = vunpack.c.l.b16 %v626
    %v1199 = vunpack.c.h.b16 %v626
    %v1200 = vunpack.c.l.b16 %v627
    %v1201 = vunpack.c.l.b16 %v628
    %v1202 = vunpack.c.h.b16 %v628
    %v1203 = vunpack.c.l.b16 %v629
    %v1204 = vunpack.c.h.b16 %v629
    %v1205 = vunpack.c.l.b16 %v630
    %v1206 = vunpack.c.h.b16 %v630
    %v1207 = vunpack.c.l.b16 %v631
    %v1208 = vunpack.c.l.b16 %v632
    %v1209 = vunpack.c.h.b16 %v632
    %v1210 = vunpack.c.l.b16 %v633
    %v1211 = vunpack.c.h.b16 %v633
    %v1212 = vunpack.c.l.b16 %v634
    %v1213 = vunpack.c.h.b16 %v634
    %v1214 = vunpack.c.l.b16 %v635
    %v1215 = vunpack.c.l.b16 %v636
    %v1216 = vunpack.c.h.b16 %v636
    %v1217 = vunpack.c.l.b16 %v637
    %v1218 = vunpack.c.h.b16 %v637
    %v1219 = vunpack.c.l.b16 %v638
    %v1220 = vunpack.c.h.b16 %v638
    %v1221 = vunpack.c.l.b16 %v639
    %v1222 = vunpack.c.l.b16 %v640
    %v1223 = vunpack.c.h.b16 %v640
    %v1224 = vunpack.c.l.b16 %v641
    %v1225 = vunpack.c.h.b16 %v641
    %v1226 = vunpack.c.l.b16 %v642
    %v1227 = vunpack.c.h.b16 %v642
    %v1228 = vunpack.c.l.b16 %v643
    %v1229 = vunpack.c.l.b16 %v644
    %v1230 = vunpack.c.h.b16 %v644
    %v1231 = vunpack.c.l.b16 %v645
    %v1232 = vunpack.c.h.b16 %v645
    %v1233 = vunpack.c.l.b16 %v646
    %v1234 = vunpack.c.h.b16 %v646
    %v1235 = vunpack.c.l.b16 %v647
    %v1236 = vunpack.c.l.b16 %v648
    %v1237 = vunpack.c.h.b16 %v648
    %v1238 = vunpack.c.l.b16 %v649
    %v1239 = vunpack.c.h.b16 %v649
    %v1240 = vunpack.c.l.b16 %v650
    %v1241 = vunpack.c.h.b16 %v650
    %v1242 = vunpack.c.l.b16 %v651
    %v1243 = vunpack.c.l.b16 %v652
    %v1244 = vunpack.c.h.b16 %v652
    %v1245 = vunpack.c.l.b16 %v653
    %v1246 = vunpack.c.h.b16 %v653
    %v1247 = vunpack.c.l.b16 %v654
    %v1248 = vunpack.c.h.b16 %v654
    %v1249 = vunpack.c.l.b16 %v655
    %v1250 = vunpack.c.l.b16 %v656
    %v1251 = vunpack.c.h.b16 %v656
    %v1252 = vunpack.c.l.b16 %v657
    %v1253 = vunpack.c.h.b16 %v657
    %v1254 = vunpack.c.l.b16 %v658
    %v1255 = vunpack.c.h.b16 %v658
    %v1256 = vunpack.c.l.b16 %v659
    %v1257 = vunpack.c.l.b16 %v660
    %v1258 = vunpack.c.h.b16 %v660
    %v1259 = vunpack.c.l.b16 %v661
    %v1260 = vunpack.c.h.b16 %v661
    %v1261 = vunpack.c.l.b16 %v662
    %v1262 = vunpack.c.h.b16 %v662
    %v1263 = vunpack.c.l.b16 %v663
    %v1264 = vunpack.c.l.b16 %v664
    %v1265 = vunpack.c.h.b16 %v664
    %v1266 = vunpack.c.l.b16 %v665
    %v1267 = vunpack.c.h.b16 %v665
    %v1268 = vunpack.c.l.b16 %v666
    %v1269 = vunpack.c.h.b16 %v666
    %v1270 = vunpack.c.l.b16 %v667
    %v1271 = vunpack.c.l.b16 %v668
    %v1272 = vunpack.c.h.b16 %v668
    %v1273 = vunpack.c.l.b16 %v669
    %v1274 = vunpack.c.h.b16 %v669
    %v1275 = vunpack.c.l.b16 %v670
    %v1276 = vunpack.c.h.b16 %v670
    %v1277 = vunpack.c.l.b16 %v671
    %v1278 = vunpack.c.l.b16 %v672
    %v1279 = vunpack.c.h.b16 %v672
    %v1280 = vunpack.c.l.b16 %v673
    %v1281 = vunpack.c.h.b16 %v673
    %v1282 = vunpack.c.l.b16 %v674
    %v1283 = vunpack.c.h.b16 %v674
    %v1284 = vunpack.c.l.b16 %v675
    %v1285 = vunpack.c.l.b16 %v676
    %v1286 = vunpack.c.h.b16 %v676
    %v1287 = vunpack.c.l.b16 %v677
    %v1288 = vunpack.c.h.b16 %v677
    %v1289 = vunpack.c.l.b16 %v678
    %v1290 = vunpack.c.h.b16 %v678
    %v1291 = vunpack.c.l.b16 %v679
    %v1292 = vunpack.c.l.b16 %v680
    %v1293 = vunpack.c.h.b16 %v680
    %v1294 = vunpack.c.l.b16 %v681
    %v1295 = vunpack.c.h.b16 %v681
    %v1296 = vunpack.c.l.b16 %v682
    %v1297 = vunpack.c.h.b16 %v682
    %v1298 = vunpack.c.l.b16 %v683
    %v1299 = vunpack.c.l.b16 %v684
    %v1300 = vunpack.c.h.b16 %v684
    %v1301 = vunpack.c.l.b16 %v685
    %v1302 = vunpack.c.h.b16 %v685
    %v1303 = vunpack.c.l.b16 %v686
    %v1304 = vunpack.c.h.b16 %v686
    %v1305 = vunpack.c.l.b16 %v687
    %v1306 = vunpack.c.l.b16 %v688
    %v1307 = vunpack.c.h.b16 %v688
    %v1308 = vunpack.c.l.b16 %v689
    %v1309 = vunpack.c.h.b16 %v689
    %v1310 = vunpack.c.l.b16 %v690
    %v1311 = vunpack.c.h.b16 %v690
    %v1312 = vunpack.c.l.b16 %v691
    %v1313 = vunpack.c.l.b16 %v692
    %v1314 = vunpack.c.h.b16 %v692
    %v1315 = vunpack.c.l.b16 %v693
    %v1316 = vunpack.c.h.b16 %v693
    %v1317 = vunpack.c.l.b16 %v694
    %v1318 = vunpack.c.h.b16 %v694
    %v1319 = vunpack.c.l.b16 %v695
    %v1320 = vunpack.c.l.b16 %v696
    %v1321 = vunpack.c.h.b16 %v696
    %v1322 = vunpack.c.l.b16 %v697
    %v1323 = vunpack.c.h.b16 %v697
    %v1324 = vunpack.c.l.b16 %v698
    %v1325 = vunpack.c.h.b16 %v698
    %v1326 = vunpack.c.l.b16 %v699
    %v1327 = vunpack.c.l.b16 %v700
    %v1328 = vunpack.c.h.b16 %v700
    %v1329 = vunpack.c.l.b16 %v701
    %v1330 = vunpack.c.h.b16 %v701
    %v1331 = vunpack.c.l.b16 %v702
    %v1332 = vunpack.c.h.b16 %v702
    %v1333 = vunpack.c.l.b16 %v703
    %v1334 = vunpack.c.l.b16 %v704
    %v1335 = vunpack.c.h.b16 %v704
    %v1336 = vunpack.c.l.b16 %v705
    %v1337 = vunpack.c.h.b16 %v705
    %v1338 = vunpack.c.l.b16 %v706
    %v1339 = vunpack.c.h.b16 %v706
    %v1340 = vunpack.c.l.b16 %v707
    %v1341 = vunpack.c.l.b16 %v708
    %v1342 = vunpack.c.h.b16 %v708
    %v1343 = vunpack.c.l.b16 %v709
    %v1344 = vunpack.c.h.b16 %v709
    %v1345 = vunpack.c.l.b16 %v710
    %v1346 = vunpack.c.h.b16 %v710
    %v1347 = vunpack.c.l.b16 %v711
    %v1348 = vunpack.c.l.b16 %v712
    %v1349 = vunpack.c.h.b16 %v712
    %v1350 = vunpack.c.l.b16 %v713
    %v1351 = vunpack.c.h.b16 %v713
    %v1352 = vunpack.c.l.b16 %v714
    %v1353 = vunpack.c.h.b16 %v714
    %v1354 = vunpack.c.l.b16 %v715
    %v1355 = vunpack.c.l.b16 %v716
    %v1356 = vunpack.c.h.b16 %v716
    %v1357 = vunpack.c.l.b16 %v717
    %v1358 = vunpack.c.h.b16 %v717
    %v1359 = vunpack.c.l.b16 %v718
    %v1360 = vunpack.c.h.b16 %v718
    %v1361 = vunpack.c.l.b16 %v719
    %v1362 = vunpack.c.l.b16 %v720
    %v1363 = vunpack.c.h.b16 %v720
    %v1364 = vunpack.c.l.b16 %v721
    %v1365 = vunpack.c.h.b16 %v721
    %v1366 = vunpack.c.l.b16 %v722
    %v1367 = vunpack.c.h.b16 %v722
    %v1368 = vunpack.c.l.b16 %v723
    %v1369 = vunpack.c.l.b16 %v724
    %v1370 = vunpack.c.h.b16 %v724
    %v1371 = vunpack.c.l.b16 %v725
    %v1372 = vunpack.c.h.b16 %v725
    %v1373 = vunpack.c.l.b16 %v726
    %v1374 = vunpack.c.h.b16 %v726
    %v1375 = vunpack.c.l.b16 %v727
    %v1376 = vunpack.c.l.b16 %v728
    %v1377 = vunpack.c.h.b16 %v728
    %v1378 = vunpack.c.l.b16 %v729
    %v1379 = vunpack.c.h.b16 %v729
    %v1380 = vunpack.c.l.b16 %v730
    %v1381 = vunpack.c.h.b16 %v730
    %v1382 = vunpack.c.l.b16 %v731
    %v1383 = vunpack.c.l.b16 %v732
    %v1384 = vunpack.c.h.b16 %v732
    %v1385 = vunpack.c.l.b16 %v733
    %v1386 = vunpack.c.h.b16 %v733
    %v1387 = vunpack.c.l.b16 %v734
    %v1388 = vunpack.c.h.b16 %v734
    %v1389 = vunpack.c.l.b16 %v735
    %v1390 = vunpack.c.l.b16 %v736
    %v1391 = vunpack.c.h.b16 %v736
    %v1392 = vunpack.c.l.b16 %v737
    %v1393 = vunpack.c.h.b16 %v737
    %v1394 = vunpack.c.l.b16 %v738
    %v1395 = vunpack.c.h.b16 %v738
    %v1396 = vunpack.c.l.b16 %v739
    %v1397 = vunpack.c.l.b16 %v740
    %v1398 = vunpack.c.h.b16 %v740
    %v1399 = vunpack.c.l.b16 %v741
    %v1400 = vunpack.c.h.b16 %v741
    %v1401 = vunpack.c.l.b16 %v742
    %v1402 = vunpack.c.h.b16 %v742
    %v1403 = vunpack.c.l.b16 %v743
    %v1404 = vunpack.c.l.b16 %v744
    %v1405 = vunpack.c.h.b16 %v744
    %v1406 = vunpack.c.l.b16 %v745
    %v1407 = vunpack.c.h.b16 %v745
    %v1408 = vunpack.c.l.b16 %v746
    %v1409 = vunpack.c.h.b16 %v746
    %v1410 = vunpack.c.l.b16 %v747
    %v1411 = vunpack.c.l.b16 %v748
    %v1412 = vunpack.c.h.b16 %v748
    %v1413 = vunpack.c.l.b16 %v749
    %v1414 = vunpack.c.h.b16 %v749
    %v1415 = vunpack.c.l.b16 %v750
    %v1416 = vunpack.c.h.b16 %v750
    %v1417 = vunpack.c.l.b16 %v751
    %v1418 = vunpack.c.l.b16 %v752
    %v1419 = vunpack.c.h.b16 %v752
    %v1420 = vunpack.c.l.b16 %v753
    %v1421 = vunpack.c.h.b16 %v753
    %v1422 = vunpack.c.l.b16 %v754
    %v1423 = vunpack.c.h.b16 %v754
    %v1424 = vunpack.c.l.b16 %v755
    %v1425 = vunpack.c.l.b16 %v756
    %v1426 = vunpack.c.h.b16 %v756
    %v1427 = vunpack.c.l.b16 %v757
    %v1428 = vunpack.c.h.b16 %v757
    %v1429 = vunpack.c.l.b16 %v758
    %v1430 = vunpack.c.h.b16 %v758
    %v1431 = vunpack.c.l.b16 %v759
    %v1432 = vunpack.c.l.b16 %v760
    %v1433 = vunpack.c.h.b16 %v760
    %v1434 = vunpack.c.l.b16 %v761
    %v1435 = vunpack.c.h.b16 %v761
    %v1436 = vunpack.c.l.b16 %v762
    %v1437 = vunpack.c.h.b16 %v762
    %v1438 = vunpack.c.l.b16 %v763
    %v1439 = vunpack.c.l.b16 %v764
    %v1440 = vunpack.c.h.b16 %v764
    %v1441 = vunpack.c.l.b16 %v765
    %v1442 = vunpack.c.h.b16 %v765
    %v1443 = vunpack.c.l.b16 %v766
    %v1444 = vunpack.c.h.b16 %v766
    %v1445 = vunpack.c.l.b16 %v767
    %v1446 = vunpack.c.l.b16 %v768
    %v1447 = vunpack.c.h.b16 %v768
    %v1448 = vunpack.c.l.b16 %v769
    %v1449 = vunpack.c.h.b16 %v769
    %v1450 = vunpack.c.l.b16 %v770
    %v1451 = vunpack.c.h.b16 %v770
    %v1452 = vunpack.c.l.b16 %v771
    %v1453 = vunpack.c.l.b16 %v772
    %v1454 = vunpack.c.h.b16 %v772
    %v1455 = vunpack.c.l.b16 %v773
    %v1456 = vunpack.c.h.b16 %v773
    %v1457 = vunpack.c.l.b16 %v774
    %v1458 = vunpack.c.h.b16 %v774
    %v1459 = vunpack.c.l.b16 %v775
    %v1460 = vunpack.c.l.b16 %v776
    %v1461 = vunpack.c.h.b16 %v776
    %v1462 = vunpack.c.l.b16 %v777
    %v1463 = vunpack.c.h.b16 %v777
    %v1464 = vunpack.c.l.b16 %v778
    %v1465 = vunpack.c.h.b16 %v778
    %v1466 = vunpack.c.l.b16 %v779
    %v1467 = vunpack.c.l.b16 %v780
    %v1468 = vunpack.c.h.b16 %v780
    %v1469 = vunpack.c.l.b16 %v781
    %v1470 = vunpack.c.h.b16 %v781
    %v1471 = vunpack.c.l.b16 %v782
    %v1472 = vunpack.c.h.b16 %v782
    %v1473 = vunpack.c.l.b16 %v783
    %v1474 = vunpack.c.l.b16 %v784
    %v1475 = vunpack.c.h.b16 %v784
    %v1476 = vunpack.c.l.b16 %v785
    %v1477 = vunpack.c.h.b16 %v785
    %v1478 = vunpack.c.l.b16 %v786
    %v1479 = vunpack.c.h.b16 %v786
    %v1480 = vunpack.c.l.b16 %v787
    %v1481 = vunpack.c.l.b16 %v788
    %v1482 = vunpack.c.h.b16 %v788
    %v1483 = vunpack.c.l.b16 %v789
    %v1484 = vunpack.c.h.b16 %v789
    %v1485 = vunpack.c.l.b16 %v790
    %v1486 = vunpack.c.h.b16 %v790
    %v1487 = vunpack.c.l.b16 %v791
    %v1488 = vunpack.c.l.b16 %v792
    %v1489 = vunpack.c.h.b16 %v792
    %v1490 = vunpack.c.l.b16 %v793
    %v1491 = vunpack.c.h.b16 %v793
    %v1492 = vunpack.c.l.b16 %v794
    %v1493 = vunpack.c.h.b16 %v794
    %v1494 = vunpack.c.l.b16 %v795
    %v1495 = vunpack.c.l.b16 %v796
    %v1496 = vunpack.c.h.b16 %v796
    %v1497 = vunpack.c.l.b16 %v797
    %v1498 = vunpack.c.h.b16 %v797
    %v1499 = vunpack.c.l.b16 %v798
    %v1500 = vunpack.c.h.b16 %v798
    %v1501 = vunpack.c.l.b16 %v799
    %v1502 = vunpack.c.l.b16 %v800
    %v1503 = vunpack.c.h.b16 %v800
    %v1504 = vunpack.c.l.b16 %v801
    %v1505 = vunpack.c.h.b16 %v801
    %v1506 = vunpack.c.l.b16 %v802
    %v1507 = vunpack.c.h.b16 %v802
    %v1508 = vunpack.c.l.b16 %v803
    %v1509 = vunpack.c.l.b16 %v804
    %v1510 = vunpack.c.h.b16 %v804
    %v1511 = vunpack.c.l.b16 %v805
    %v1512 = vunpack.c.h.b16 %v805
    %v1513 = vunpack.c.l.b16 %v806
    %v1514 = vunpack.c.h.b16 %v806
    %v1515 = vunpack.c.l.b16 %v807
    %v1516 = vunpack.c.l.b16 %v808
    %v1517 = vunpack.c.h.b16 %v808
    %v1518 = vunpack.c.l.b16 %v809
    %v1519 = vunpack.c.h.b16 %v809
    %v1520 = vunpack.c.l.b16 %v810
    %v1521 = vunpack.c.h.b16 %v810
    %v1522 = vunpack.c.l.b16 %v811
    %v1523 = vunpack.c.l.b16 %v812
    %v1524 = vunpack.c.h.b16 %v812
    %v1525 = vunpack.c.l.b16 %v813
    %v1526 = vunpack.c.h.b16 %v813
    %v1527 = vunpack.c.l.b16 %v814
    %v1528 = vunpack.c.h.b16 %v814
    %v1529 = vunpack.c.l.b16 %v815
    %v1530 = vunpack.c.l.b16 %v816
    %v1531 = vunpack.c.h.b16 %v816
    %v1532 = vunpack.c.l.b16 %v817
    %v1533 = vunpack.c.h.b16 %v817
    %v1534 = vunpack.c.l.b16 %v818
    %v1535 = vunpack.c.h.b16 %v818
    %v1536 = vunpack.c.l.b16 %v819
    %v1537 = vunpack.c.l.b16 %v820
    %v1538 = vunpack.c.h.b16 %v820
    %v1539 = vunpack.c.l.b16 %v821
    %v1540 = vunpack.c.h.b16 %v821
    %v1541 = vunpack.c.l.b16 %v822
    %v1542 = vunpack.c.h.b16 %v822
    %v1543 = vunpack.c.l.b16 %v823
    %v1544 = vunpack.c.l.b16 %v824
    %v1545 = vunpack.c.h.b16 %v824
    %v1546 = vunpack.c.l.b16 %v825
    %v1547 = vunpack.c.h.b16 %v825
    %v1548 = vunpack.c.l.b16 %v826
    %v1549 = vunpack.c.h.b16 %v826
    %v1550 = vunpack.c.l.b16 %v827
    %v1551 = vunpack.c.l.b16 %v828
    %v1552 = vunpack.c.h.b16 %v828
    %v1553 = vunpack.c.l.b16 %v829
    %v1554 = vunpack.c.h.b16 %v829
    %v1555 = vunpack.c.l.b16 %v830
    %v1556 = vunpack.c.h.b16 %v830
    %v1557 = vunpack.c.l.b16 %v831
    %v1558 = vunpack.c.l.b16 %v832
    %v1559 = vunpack.c.h.b16 %v832
    %v1560 = vunpack.c.l.b16 %v833
    %v1561 = vunpack.c.h.b16 %v833
    %v1562 = vunpack.c.l.b16 %v834
    %v1563 = vunpack.c.h.b16 %v834
    %v1564 = vunpack.c.l.b16 %v835
    %v1565 = vunpack.c.l.b16 %v836
    %v1566 = vunpack.c.h.b16 %v836
    %v1567 = vunpack.c.l.b16 %v837
    %v1568 = vunpack.c.h.b16 %v837
    %v1569 = vunpack.c.l.b16 %v838
    %v1570 = vunpack.c.h.b16 %v838
    %v1571 = vunpack.c.l.b16 %v839
    %v1572 = vunpack.c.l.b16 %v840
    %v1573 = vunpack.c.h.b16 %v840
    %v1574 = vunpack.c.l.b16 %v841
    %v1575 = vunpack.c.h.b16 %v841
    %v1576 = vunpack.c.l.b16 %v842
    %v1577 = vunpack.c.h.b16 %v842
    %v1578 = vunpack.c.l.b16 %v843
    %v1579 = vunpack.c.l.b16 %v844
    %v1580 = vunpack.c.h.b16 %v844
    %v1581 = vunpack.c.l.b16 %v845
    %v1582 = vunpack.c.h.b16 %v845
    %v1583 = vunpack.c.l.b16 %v846
    %v1584 = vunpack.c.h.b16 %v846
    %v1585 = vunpack.c.l.b16 %v847
    %v1586 = vunpack.c.l.b16 %v848
    %v1587 = vunpack.c.h.b16 %v848
    %v1588 = vunpack.c.l.b16 %v849
    %v1589 = vunpack.c.h.b16 %v849
    %v1590 = vunpack.c.l.b16 %v850
    %v1591 = vunpack.c.h.b16 %v850
    %v1592 = vunpack.c.l.b16 %v851
    %v1593 = vpack.c.b16 %v1152, %v1145
    %v1594 = vpack.c.b16 %v1153, %v1146
    %v1595 = vpack.c.b16 %v1154, %v1147
    %v1596 = vpack.c.b16 %v1155, %v1148
    %v1597 = vpack.c.b16 %v1156, %v1149
    %v1598 = vpack.c.b16 %v1157, %v1150
    %v1599 = vpack.c.b16 %v1158, %v1151
    %v1600 = vpack.c.b16 %v1166, %v1159
    %v1601 = vpack.c.b16 %v1167, %v1160
    %v1602 = vpack.c.b16 %v1168, %v1161
    %v1603 = vpack.c.b16 %v1169, %v1162
    %v1604 = vpack.c.b16 %v1170, %v1163
    %v1605 = vpack.c.b16 %v1171, %v1164
    %v1606 = vpack.c.b16 %v1172, %v1165
    %v1607 = vpack.c.b16 %v1180, %v1173
    %v1608 = vpack.c.b16 %v1181, %v1174
    %v1609 = vpack.c.b16 %v1182, %v1175
    %v1610 = vpack.c.b16 %v1183, %v1176
    %v1611 = vpack.c.b16 %v1184, %v1177
    %v1612 = vpack.c.b16 %v1185, %v1178
    %v1613 = vpack.c.b16 %v1186, %v1179
    %v1614 = vpack.c.b16 %v1194, %v1187
    %v1615 = vpack.c.b16 %v1195, %v1188
    %v1616 = vpack.c.b16 %v1196, %v1189
    %v1617 = vpack.c.b16 %v1197, %v1190
    %v1618 = vpack.c.b16 %v1198, %v1191
    %v1619 = vpack.c.b16 %v1199, %v1192
    %v1620 = vpack.c.b16 %v1200, %v1193
    %v1621 = vpack.c.b16 %v1208, %v1201
    %v1622 = vpack.c.b16 %v1209, %v1202
    %v1623 = vpack.c.b16 %v1210, %v1203
    %v1624 = vpack.c.b16 %v1211, %v1204
    %v1625 = vpack.c.b16 %v1212, %v1205
    %v1626 = vpack.c.b16 %v1213, %v1206
    %v1627 = vpack.c.b16 %v1214, %v1207
    %v1628 = vpack.c.b16 %v1222, %v1215
    %v1629 = vpack.c.b16 %v1223, %v1216
    %v1630 = vpack.c.b16 %v1224, %v1217
    %v1631 = vpack.c.b16 %v1225, %v1218
    %v1632 = vpack.c.b16 %v1226, %v1219
    %v1633 = vpack.c.b16 %v1227, %v1220
    %v1634 = vpack.c.b16 %v1228, %v1221
    %v1635 = vpack.c.b16 %v1236, %v1229
    %v1636 = vpack.c.b16 %v1237, %v1230
    %v1637 = vpack.c.b16 %v1238, %v1231
    %v1638 = vpack.c.b16 %v1239, %v1232
    %v1639 = vpack.c.b16 %v1240, %v1233
    %v1640 = vpack.c.b16 %v1241, %v1234
    %v1641 = vpack.c.b16 %v1242, %v1235
    %v1642 = vpack.c.b16 %v1250, %v1243
    %v1643 = vpack.c.b16 %v1251, %v1244
    %v1644 = vpack.c.b16 %v1252, %v1245
    %v1645 = vpack.c.b16 %v1253, %v1246
    %v1646 = vpack.c.b16 %v1254, %v1247
    %v1647 = vpack.c.b16 %v1255, %v1248
    %v1648 = vpack.c.b16 %v1256, %v1249
    %v1649 = vpack.c.b16 %v1264, %v1257
    %v1650 = vpack.c.b16 %v1265, %v1258
    %v1651 = vpack.c.b16 %v1266, %v1259
    %v1652 = vpack.c.b16 %v1267, %v1260
    %v1653 = vpack.c.b16 %v1268, %v1261
    %v1654 = vpack.c.b16 %v1269, %v1262
    %v1655 = vpack.c.b16 %v1270, %v1263
    %v1656 = vpack.c.b16 %v1278, %v1271
    %v1657 = vpack.c.b16 %v1279, %v1272
    %v1658 = vpack.c.b16 %v1280, %v1273
    %v1659 = vpack.c.b16 %v1281, %v1274
    %v1660 = vpack.c.b16 %v1282, %v1275
    %v1661 = vpack.c.b16 %v1283, %v1276
    %v1662 = vpack.c.b16 %v1284, %v1277
    %v1663 = vpack.c.b16 %v1292, %v1285
    %v1664 = vpack.c.b16 %v1293, %v1286
    %v1665 = vpack.c.b16 %v1294, %v1287
    %v1666 = vpack.c.b16 %v1295, %v1288
    %v1667 = vpack.c.b16 %v1296, %v1289
    %v1668 = vpack.c.b16 %v1297, %v1290
    %v1669 = vpack.c.b16 %v1298, %v1291
    %v1670 = vpack.c.b16 %v1306, %v1299
    %v1671 = vpack.c.b16 %v1307, %v1300
    %v1672 = vpack.c.b16 %v1308, %v1301
    %v1673 = vpack.c.b16 %v1309, %v1302
    %v1674 = vpack.c.b16 %v1310, %v1303
    %v1675 = vpack.c.b16 %v1311, %v1304
    %v1676 = vpack.c.b16 %v1312, %v1305
    %v1677 = vpack.c.b16 %v1320, %v1313
    %v1678 = vpack.c.b16 %v1321, %v1314
    %v1679 = vpack.c.b16 %v1322, %v1315
    %v1680 = vpack.c.b16 %v1323, %v1316
    %v1681 = vpack.c.b16 %v1324, %v1317
    %v1682 = vpack.c.b16 %v1325, %v1318
    %v1683 = vpack.c.b16 %v1326, %v1319
    %v1684 = vpack.c.b16 %v1334, %v1327
    %v1685 = vpack.c.b16 %v1335, %v1328
    %v1686 = vpack.c.b16 %v1336, %v1329
    %v1687 = vpack.c.b16 %v1337, %v1330
    %v1688 = vpack.c.b16 %v1338, %v1331
    %v1689 = vpack.c.b16 %v1339, %v1332
    %v1690 = vpack.c.b16 %v1340, %v1333
    %v1691 = vpack.c.b16 %v1348, %v1341
    %v1692 = vpack.c.b16 %v1349, %v1342
    %v1693 = vpack.c.b16 %v1350, %v1343
    %v1694 = vpack.c.b16 %v1351, %v1344
    %v1695 = vpack.c.b16 %v1352, %v1345
    %v1696 = vpack.c.b16 %v1353, %v1346
    %v1697 = vpack.c.b16 %v1354, %v1347
    %v1698 = vpack.c.b16 %v1362, %v1355
    %v1699 = vpack.c.b16 %v1363, %v1356
    %v1700 = vpack.c.b16 %v1364, %v1357
    %v1701 = vpack.c.b16 %v1365, %v1358
    %v1702 = vpack.c.b16 %v1366, %v1359
    %v1703 = vpack.c.b16 %v1367, %v1360
    %v1704 = vpack.c.b16 %v1368, %v1361
    %v1705 = vpack.c.b16 %v1376, %v1369
    %v1706 = vpack.c.b16 %v1377, %v1370
    %v1707 = vpack.c.b16 %v1378, %v1371
    %v1708 = vpack.c.b16 %v1379, %v1372
    %v1709 = vpack.c.b16 %v1380, %v1373
    %v1710 = vpack.c.b16 %v1381, %v1374
    %v1711 = vpack.c.b16 %v1382, %v1375
    %v1712 = vpack.c.b16 %v1390, %v1383
    %v1713 = vpack.c.b16 %v1391, %v1384
    %v1714 = vpack.c.b16 %v1392, %v1385
    %v1715 = vpack.c.b16 %v1393, %v1386
    %v1716 = vpack.c.b16 %v1394, %v1387
    %v1717 = vpack.c.b16 %v1395, %v1388
    %v1718 = vpack.c.b16 %v1396, %v1389
    %v1719 = vpack.c.b16 %v1404, %v1397
    %v1720 = vpack.c.b16 %v1405, %v1398
    %v1721 = vpack.c.b16 %v1406, %v1399
    %v1722 = vpack.c.b16 %v1407, %v1400
    %v1723 = vpack.c.b16 %v1408, %v1401
    %v1724 = vpack.c.b16 %v1409, %v1402
    %v1725 = vpack.c.b16 %v1410, %v1403
    %v1726 = vpack.c.b16 %v1418, %v1411
    %v1727 = vpack.c.b16 %v1419, %v1412
    %v1728 = vpack.c.b16 %v1420, %v1413
    %v1729 = vpack.c.b16 %v1421, %v1414
    %v1730 = vpack.c.b16 %v1422, %v1415
    %v1731 = vpack.c.b16 %v1423, %v1416
    %v1732 = vpack.c.b16 %v1424, %v1417
    %v1733 = vpack.c.b16 %v1432, %v1425
    %v1734 = vpack.c.b16 %v1433, %v1426
    %v1735 = vpack.c.b16 %v1434, %v1427
    %v1736 = vpack.c.b16 %v1435, %v1428
    %v1737 = vpack.c.b16 %v1436, %v1429
    %v1738 = vpack.c.b16 %v1437, %v1430
    %v1739 = vpack.c.b16 %v1438, %v1431
    %v1740 = vpack.c.b16 %v1446, %v1439
    %v1741 = vpack.c.b16 %v1447, %v1440
    %v1742 = vpack.c.b16 %v1448, %v1441
    %v1743 = vpack.c.b16 %v1449, %v1442
    %v1744 = vpack.c.b16 %v1450, %v1443
    %v1745 = vpack.c.b16 %v1451, %v1444
    %v1746 = vpack.c.b16 %v1452, %v1445
    %v1747 = vpack.c.b16 %v1460, %v1453
    %v1748 = vpack.c.b16 %v1461, %v1454
    %v1749 = vpack.c.b16 %v1462, %v1455
    %v1750 = vpack.c.b16 %v1463, %v1456
    %v1751 = vpack.c.b16 %v1464, %v1457
    %v1752 = vpack.c.b16 %v1465, %v1458
    %v1753 = vpack.c.b16 %v1466, %v1459
    %v1754 = vpack.c.b16 %v1474, %v1467
    %v1755 = vpack.c.b16 %v1475, %v1468
    %v1756 = vpack.c.b16 %v1476, %v1469
    %v1757 = vpack.c.b16 %v1477, %v1470
    %v1758 = vpack.c.b16 %v1478, %v1471
    %v1759 = vpack.c.b16 %v1479, %v1472
    %v1760 = vpack.c.b16 %v1480, %v1473
    %v1761 = vpack.c.b16 %v1488, %v1481
    %v1762 = vpack.c.b16 %v1489, %v1482
    %v1763 = vpack.c.b16 %v1490, %v1483
    %v1764 = vpack.c.b16 %v1491, %v1484
    %v1765 = vpack.c.b16 %v1492, %v1485
    %v1766 = vpack.c.b16 %v1493, %v1486
    %v1767 = vpack.c.b16 %v1494, %v1487
    %v1768 = vpack.c.b16 %v1502, %v1495
    %v1769 = vpack.c.b16 %v1503, %v1496
    %v1770 = vpack.c.b16 %v1504, %v1497
    %v1771 = vpack.c.b16 %v1505, %v1498
    %v1772 = vpack.c.b16 %v1506, %v1499
    %v1773 = vpack.c.b16 %v1507, %v1500
    %v1774 = vpack.c.b16 %v1508, %v1501
    %v1775 = vpack.c.b16 %v1516, %v1509
    %v1776 = vpack.c.b16 %v1517, %v1510
    %v1777 = vpack.c.b16 %v1518, %v1511
    %v1778 = vpack.c.b16 %v1519, %v1512
    %v1779 = vpack.c.b16 %v1520, %v1513
    %v1780 = vpack.c.b16 %v1521, %v1514
    %v1781 = vpack.c.b16 %v1522, %v1515
    %v1782 = vpack.c.b16 %v1530, %v1523
    %v1783 = vpack.c.b16 %v1531, %v1524
    %v1784 = vpack.c.b16 %v1532, %v1525
    %v1785 = vpack.c.b16 %v1533, %v1526
    %v1786 = vpack.c.b16 %v1534, %v1527
    %v1787 = vpack.c.b16 %v1535, %v1528
    %v1788 = vpack.c.b16 %v1536, %v1529
    %v1789 = vpack.c.b16 %v1544, %v1537
    %v1790 = vpack.c.b16 %v1545, %v1538
    %v1791 = vpack.c.b16 %v1546, %v1539
    %v1792 = vpack.c.b16 %v1547, %v1540
    %v1793 = vpack.c.b16 %v1548, %v1541
    %v1794 = vpack.c.b16 %v1549, %v1542
    %v1795 = vpack.c.b16 %v1550, %v1543
    %v1796 = vpack.c.b16 %v1558, %v1551
    %v1797 = vpack.c.b16 %v1559, %v1552
    %v1798 = vpack.c.b16 %v1560, %v1553
    %v1799 = vpack.c.b16 %v1561, %v1554
    %v1800 = vpack.c.b16 %v1562, %v1555
    %v1801 = vpack.c.b16 %v1563, %v1556
    %v1802 = vpack.c.b16 %v1564, %v1557
    %v1803 = vpack.c.b16 %v1572, %v1565
    %v1804 = vpack.c.b16 %v1573, %v1566
    %v1805 = vpack.c.b16 %v1574, %v1567
    %v1806 = vpack.c.b16 %v1575, %v1568
    %v1807 = vpack.c.b16 %v1576, %v1569
    %v1808 = vpack.c.b16 %v1577, %v1570
    %v1809 = vpack.c.b16 %v1578, %v1571
    %v1810 = vpack.c.b16 %v1586, %v1579
    %v1811 = vpack.c.b16 %v1587, %v1580
    %v1812 = vpack.c.b16 %v1588, %v1581
    %v1813 = vpack.c.b16 %v1589, %v1582
    %v1814 = vpack.c.b16 %v1590, %v1583
    %v1815 = vpack.c.b16 %v1591, %v1584
    %v1816 = vpack.c.b16 %v1592, %v1585
    %2041 = vmatprep.subr.bf16.mxu0 %v1643
    %2042 = vmatpush1.bf16.msra.mxu0 %v1642
    %2043 = vmatprep.subr.bf16.mxu0 %v1636
    %2044 = vmatpush1.bf16.msra.mxu0 %v1635
    %2045 = vmatprep.subr.bf16.mxu0 %v1629
    %2046 = vmatpush1.bf16.msra.mxu0 %v1628
    %2047 = vmatprep.subr.bf16.mxu0 %v1622
    %2048 = vmatpush1.bf16.msra.mxu0 %v1621
    %2049 = vmatprep.subr.bf16.mxu0 %v1615
    %2050 = vmatpush1.bf16.msra.mxu0 %v1614
    %2051 = vmatprep.subr.bf16.mxu0 %v1608
    %2052 = vmatpush1.bf16.msra.mxu0 %v1607
    %2053 = vmatprep.subr.bf16.mxu0 %v1601
    %2054 = vmatpush1.bf16.msra.mxu0 %v1600
    %2055 = vmatprep.subr.bf16.mxu0 %v1594
    %2056 = vmatpush1.bf16.msra.mxu0 %v1593
    %2057 = vmatprep.subr.bf16.mxu0 %v1699
    %2058 = vmatpush2.bf16.msra.mxu0 %v1698
    %2059 = vmatprep.subr.bf16.mxu0 %v1692
    %2060 = vmatpush2.bf16.msra.mxu0 %v1691
    %2061 = vmatprep.subr.bf16.mxu0 %v1685
    %2062 = vmatpush2.bf16.msra.mxu0 %v1684
    %2063 = vmatprep.subr.bf16.mxu0 %v1678
    %2064 = vmatpush2.bf16.msra.mxu0 %v1677
    %2065 = vmatprep.subr.bf16.mxu0 %v1671
    %2066 = vmatpush2.bf16.msra.mxu0 %v1670
    %2067 = vmatprep.subr.bf16.mxu0 %v1664
    %2068 = vmatpush2.bf16.msra.mxu0 %v1663
    %2069 = vmatprep.subr.bf16.mxu0 %v1657
    %2070 = vmatpush2.bf16.msra.mxu0 %v1656
    %2071 = vmatprep.subr.bf16.mxu0 %v1650
    %2072 = vmatpush2.bf16.msra.mxu0 %v1649
    %2073 = vmatprep.mubr.bf16.mxu0 %v593
    %2074 = vmatmul.mubr.bf16.gmra.mxu0 %v592
    %v2075 = vpop.f32.mrf.mxu0
    %v2076 = vadd.f32 %v857, %v2075
    %v2077 = vpop.f32.mrf.mxu0
    %v2078 = vadd.f32 %v861, %v2077
    %v2079 = vpop.f32.mrf.mxu0
    %v2080 = vpop.f32.mrf.mxu0
    %2081 = vdwg.mxu0
    %2082 = vmatprep.subr.bf16.mxu0 %v1755
    %2083 = vmatpush1.bf16.msra.mxu0 %v1754
    %2084 = vmatprep.subr.bf16.mxu0 %v1748
    %2085 = vmatpush1.bf16.msra.mxu0 %v1747
    %2086 = vmatprep.subr.bf16.mxu0 %v1741
    %2087 = vmatpush1.bf16.msra.mxu0 %v1740
    %2088 = vmatprep.subr.bf16.mxu0 %v1734
    %2089 = vmatpush1.bf16.msra.mxu0 %v1733
    %2090 = vmatprep.subr.bf16.mxu0 %v1727
    %2091 = vmatpush1.bf16.msra.mxu0 %v1726
    %2092 = vmatprep.subr.bf16.mxu0 %v1720
    %2093 = vmatpush1.bf16.msra.mxu0 %v1719
    %2094 = vmatprep.subr.bf16.mxu0 %v1713
    %2095 = vmatpush1.bf16.msra.mxu0 %v1712
    %2096 = vmatprep.subr.bf16.mxu0 %v1706
    %2097 = vmatpush1.bf16.msra.mxu0 %v1705
    %2098 = vmatprep.subr.bf16.mxu0 %v1811
    %2099 = vmatpush2.bf16.msra.mxu0 %v1810
    %2100 = vmatprep.subr.bf16.mxu0 %v1804
    %2101 = vmatpush2.bf16.msra.mxu0 %v1803
    %2102 = vmatprep.subr.bf16.mxu0 %v1797
    %2103 = vmatpush2.bf16.msra.mxu0 %v1796
    %2104 = vmatprep.subr.bf16.mxu0 %v1790
    %2105 = vmatpush2.bf16.msra.mxu0 %v1789
    %2106 = vmatprep.subr.bf16.mxu0 %v1783
    %2107 = vmatpush2.bf16.msra.mxu0 %v1782
    %2108 = vmatprep.subr.bf16.mxu0 %v1776
    %2109 = vmatpush2.bf16.msra.mxu0 %v1775
    %2110 = vmatprep.subr.bf16.mxu0 %v1769
    %2111 = vmatpush2.bf16.msra.mxu0 %v1768
    %2112 = vmatprep.subr.bf16.mxu0 %v1762
    %2113 = vmatpush2.bf16.msra.mxu0 %v1761
    %2114 = vmatprep.mubr.bf16.mxu0 %v595
    %2115 = vmatmul.mubr.bf16.gmra.mxu0 %v594
    %v2116 = vpop.f32.mrf.mxu0
    %v2117 = vadd.f32 %v2076, %v2116
    %v2118 = vpop.f32.mrf.mxu0
    %v2119 = vadd.f32 %v2078, %v2118
    %v2120 = vpop.f32.mrf.mxu0
    %v2121 = vpop.f32.mrf.mxu0
    %2122 = vdwg.mxu0
    %2123 = vmatprep.subr.bf16.mxu0 %v1645
    %2124 = vmatpush1.bf16.msra.mxu0 %v1644
    %2125 = vmatprep.subr.bf16.mxu0 %v1638
    %2126 = vmatpush1.bf16.msra.mxu0 %v1637
    %2127 = vmatprep.subr.bf16.mxu0 %v1631
    %2128 = vmatpush1.bf16.msra.mxu0 %v1630
    %2129 = vmatprep.subr.bf16.mxu0 %v1624
    %2130 = vmatpush1.bf16.msra.mxu0 %v1623
    %2131 = vmatprep.subr.bf16.mxu0 %v1617
    %2132 = vmatpush1.bf16.msra.mxu0 %v1616
    %2133 = vmatprep.subr.bf16.mxu0 %v1610
    %2134 = vmatpush1.bf16.msra.mxu0 %v1609
    %2135 = vmatprep.subr.bf16.mxu0 %v1603
    %2136 = vmatpush1.bf16.msra.mxu0 %v1602
    %2137 = vmatprep.subr.bf16.mxu0 %v1596
    %2138 = vmatpush1.bf16.msra.mxu0 %v1595
    %2139 = vmatprep.subr.bf16.mxu0 %v1701
    %2140 = vmatpush2.bf16.msra.mxu0 %v1700
    %2141 = vmatprep.subr.bf16.mxu0 %v1694
    %2142 = vmatpush2.bf16.msra.mxu0 %v1693
    %2143 = vmatprep.subr.bf16.mxu0 %v1687
    %2144 = vmatpush2.bf16.msra.mxu0 %v1686
    %2145 = vmatprep.subr.bf16.mxu0 %v1680
    %2146 = vmatpush2.bf16.msra.mxu0 %v1679
    %2147 = vmatprep.subr.bf16.mxu0 %v1673
    %2148 = vmatpush2.bf16.msra.mxu0 %v1672
    %2149 = vmatprep.subr.bf16.mxu0 %v1666
    %2150 = vmatpush2.bf16.msra.mxu0 %v1665
    %2151 = vmatprep.subr.bf16.mxu0 %v1659
    %2152 = vmatpush2.bf16.msra.mxu0 %v1658
    %2153 = vmatprep.subr.bf16.mxu0 %v1652
    %2154 = vmatpush2.bf16.msra.mxu0 %v1651
    %2155 = vmatprep.mubr.bf16.mxu0 %v593
    %2156 = vmatmul.mubr.bf16.gmra.mxu0 %v592
    %v2157 = vpop.f32.mrf.mxu0
    %v2158 = vadd.f32 %v865, %v2157
    %v2159 = vpop.f32.mrf.mxu0
    %v2160 = vadd.f32 %v869, %v2159
    %v2161 = vpop.f32.mrf.mxu0
    %v2162 = vpop.f32.mrf.mxu0
    %2163 = vdwg.mxu0
    %2164 = vmatprep.subr.bf16.mxu0 %v1757
    %2165 = vmatpush1.bf16.msra.mxu0 %v1756
    %2166 = vmatprep.subr.bf16.mxu0 %v1750
    %2167 = vmatpush1.bf16.msra.mxu0 %v1749
    %2168 = vmatprep.subr.bf16.mxu0 %v1743
    %2169 = vmatpush1.bf16.msra.mxu0 %v1742
    %2170 = vmatprep.subr.bf16.mxu0 %v1736
    %2171 = vmatpush1.bf16.msra.mxu0 %v1735
    %2172 = vmatprep.subr.bf16.mxu0 %v1729
    %2173 = vmatpush1.bf16.msra.mxu0 %v1728
    %2174 = vmatprep.subr.bf16.mxu0 %v1722
    %2175 = vmatpush1.bf16.msra.mxu0 %v1721
    %2176 = vmatprep.subr.bf16.mxu0 %v1715
    %2177 = vmatpush1.bf16.msra.mxu0 %v1714
    %2178 = vmatprep.subr.bf16.mxu0 %v1708
    %2179 = vmatpush1.bf16.msra.mxu0 %v1707
    %2180 = vmatprep.subr.bf16.mxu0 %v1813
    %2181 = vmatpush2.bf16.msra.mxu0 %v1812
    %2182 = vmatprep.subr.bf16.mxu0 %v1806
    %2183 = vmatpush2.bf16.msra.mxu0 %v1805
    %2184 = vmatprep.subr.bf16.mxu0 %v1799
    %2185 = vmatpush2.bf16.msra.mxu0 %v1798
    %2186 = vmatprep.subr.bf16.mxu0 %v1792
    %2187 = vmatpush2.bf16.msra.mxu0 %v1791
    %2188 = vmatprep.subr.bf16.mxu0 %v1785
    %2189 = vmatpush2.bf16.msra.mxu0 %v1784
    %2190 = vmatprep.subr.bf16.mxu0 %v1778
    %2191 = vmatpush2.bf16.msra.mxu0 %v1777
    %2192 = vmatprep.subr.bf16.mxu0 %v1771
    %2193 = vmatpush2.bf16.msra.mxu0 %v1770
    %2194 = vmatprep.subr.bf16.mxu0 %v1764
    %2195 = vmatpush2.bf16.msra.mxu0 %v1763
    %2196 = vmatprep.mubr.bf16.mxu0 %v595
    %2197 = vmatmul.mubr.bf16.gmra.mxu0 %v594
    %v2198 = vpop.f32.mrf.mxu0
    %v2199 = vadd.f32 %v2158, %v2198
    %v2200 = vpop.f32.mrf.mxu0
    %v2201 = vadd.f32 %v2160, %v2200
    %v2202 = vpop.f32.mrf.mxu0
    %v2203 = vpop.f32.mrf.mxu0
    %2204 = vdwg.mxu0
    %2205 = vmatprep.subr.bf16.mxu0 %v1647
    %2206 = vmatpush1.bf16.msra.mxu0 %v1646
    %2207 = vmatprep.subr.bf16.mxu0 %v1640
    %2208 = vmatpush1.bf16.msra.mxu0 %v1639
    %2209 = vmatprep.subr.bf16.mxu0 %v1633
    %2210 = vmatpush1.bf16.msra.mxu0 %v1632
    %2211 = vmatprep.subr.bf16.mxu0 %v1626
    %2212 = vmatpush1.bf16.msra.mxu0 %v1625
    %2213 = vmatprep.subr.bf16.mxu0 %v1619
    %2214 = vmatpush1.bf16.msra.mxu0 %v1618
    %2215 = vmatprep.subr.bf16.mxu0 %v1612
    %2216 = vmatpush1.bf16.msra.mxu0 %v1611
    %2217 = vmatprep.subr.bf16.mxu0 %v1605
    %2218 = vmatpush1.bf16.msra.mxu0 %v1604
    %2219 = vmatprep.subr.bf16.mxu0 %v1598
    %2220 = vmatpush1.bf16.msra.mxu0 %v1597
    %2221 = vmatprep.subr.bf16.mxu0 %v1703
    %2222 = vmatpush2.bf16.msra.mxu0 %v1702
    %2223 = vmatprep.subr.bf16.mxu0 %v1696
    %2224 = vmatpush2.bf16.msra.mxu0 %v1695
    %2225 = vmatprep.subr.bf16.mxu0 %v1689
    %2226 = vmatpush2.bf16.msra.mxu0 %v1688
    %2227 = vmatprep.subr.bf16.mxu0 %v1682
    %2228 = vmatpush2.bf16.msra.mxu0 %v1681
    %2229 = vmatprep.subr.bf16.mxu0 %v1675
    %2230 = vmatpush2.bf16.msra.mxu0 %v1674
    %2231 = vmatprep.subr.bf16.mxu0 %v1668
    %2232 = vmatpush2.bf16.msra.mxu0 %v1667
    %2233 = vmatprep.subr.bf16.mxu0 %v1661
    %2234 = vmatpush2.bf16.msra.mxu0 %v1660
    %2235 = vmatprep.subr.bf16.mxu0 %v1654
    %2236 = vmatpush2.bf16.msra.mxu0 %v1653
    %2237 = vmatprep.mubr.bf16.mxu0 %v593
    %2238 = vmatmul.mubr.bf16.gmra.mxu0 %v592
    %v2239 = vpop.f32.mrf.mxu0
    %v2240 = vadd.f32 %v873, %v2239
    %v2241 = vpop.f32.mrf.mxu0
    %v2242 = vadd.f32 %v877, %v2241
    %v2243 = vpop.f32.mrf.mxu0
    %v2244 = vpop.f32.mrf.mxu0
    %2245 = vdwg.mxu0
    %2246 = vmatprep.subr.bf16.mxu0 %v1759
    %2247 = vmatpush1.bf16.msra.mxu0 %v1758
    %2248 = vmatprep.subr.bf16.mxu0 %v1752
    %2249 = vmatpush1.bf16.msra.mxu0 %v1751
    %2250 = vmatprep.subr.bf16.mxu0 %v1745
    %2251 = vmatpush1.bf16.msra.mxu0 %v1744
    %2252 = vmatprep.subr.bf16.mxu0 %v1738
    %2253 = vmatpush1.bf16.msra.mxu0 %v1737
    %2254 = vmatprep.subr.bf16.mxu0 %v1731
    %2255 = vmatpush1.bf16.msra.mxu0 %v1730
    %2256 = vmatprep.subr.bf16.mxu0 %v1724
    %2257 = vmatpush1.bf16.msra.mxu0 %v1723
    %2258 = vmatprep.subr.bf16.mxu0 %v1717
    %2259 = vmatpush1.bf16.msra.mxu0 %v1716
    %2260 = vmatprep.subr.bf16.mxu0 %v1710
    %2261 = vmatpush1.bf16.msra.mxu0 %v1709
    %2262 = vmatprep.subr.bf16.mxu0 %v1815
    %2263 = vmatpush2.bf16.msra.mxu0 %v1814
    %2264 = vmatprep.subr.bf16.mxu0 %v1808
    %2265 = vmatpush2.bf16.msra.mxu0 %v1807
    %2266 = vmatprep.subr.bf16.mxu0 %v1801
    %2267 = vmatpush2.bf16.msra.mxu0 %v1800
    %2268 = vmatprep.subr.bf16.mxu0 %v1794
    %2269 = vmatpush2.bf16.msra.mxu0 %v1793
    %2270 = vmatprep.subr.bf16.mxu0 %v1787
    %2271 = vmatpush2.bf16.msra.mxu0 %v1786
    %2272 = vmatprep.subr.bf16.mxu0 %v1780
    %2273 = vmatpush2.bf16.msra.mxu0 %v1779
    %2274 = vmatprep.subr.bf16.mxu0 %v1773
    %2275 = vmatpush2.bf16.msra.mxu0 %v1772
    %2276 = vmatprep.subr.bf16.mxu0 %v1766
    %2277 = vmatpush2.bf16.msra.mxu0 %v1765
    %2278 = vmatprep.mubr.bf16.mxu0 %v595
    %2279 = vmatmul.mubr.bf16.gmra.mxu0 %v594
    %v2280 = vpop.f32.mrf.mxu0
    %v2281 = vadd.f32 %v2240, %v2280
    %v2282 = vpop.f32.mrf.mxu0
    %v2283 = vadd.f32 %v2242, %v2282
    %v2284 = vpop.f32.mrf.mxu0
    %v2285 = vpop.f32.mrf.mxu0
    %2286 = vdwg.mxu0
    %2287 = vmatprep.subr.bf16.mxu0 0
    %2288 = vmatpush1.bf16.msra.mxu0 %v1648
    %2289 = vmatprep.subr.bf16.mxu0 0
    %2290 = vmatpush1.bf16.msra.mxu0 %v1641
    %2291 = vmatprep.subr.bf16.mxu0 0
    %2292 = vmatpush1.bf16.msra.mxu0 %v1634
    %2293 = vmatprep.subr.bf16.mxu0 0
    %2294 = vmatpush1.bf16.msra.mxu0 %v1627
    %2295 = vmatprep.subr.bf16.mxu0 0
    %2296 = vmatpush1.bf16.msra.mxu0 %v1620
    %2297 = vmatprep.subr.bf16.mxu0 0
    %2298 = vmatpush1.bf16.msra.mxu0 %v1613
    %2299 = vmatprep.subr.bf16.mxu0 0
    %2300 = vmatpush1.bf16.msra.mxu0 %v1606
    %2301 = vmatprep.subr.bf16.mxu0 0
    %2302 = vmatpush1.bf16.msra.mxu0 %v1599
    %2303 = vmatprep.subr.bf16.mxu0 0
    %2304 = vmatpush2.bf16.msra.mxu0 %v1704
    %2305 = vmatprep.subr.bf16.mxu0 0
    %2306 = vmatpush2.bf16.msra.mxu0 %v1697
    %2307 = vmatprep.subr.bf16.mxu0 0
    %2308 = vmatpush2.bf16.msra.mxu0 %v1690
    %2309 = vmatprep.subr.bf16.mxu0 0
    %2310 = vmatpush2.bf16.msra.mxu0 %v1683
    %2311 = vmatprep.subr.bf16.mxu0 0
    %2312 = vmatpush2.bf16.msra.mxu0 %v1676
    %2313 = vmatprep.subr.bf16.mxu0 0
    %2314 = vmatpush2.bf16.msra.mxu0 %v1669
    %2315 = vmatprep.subr.bf16.mxu0 0
    %2316 = vmatpush2.bf16.msra.mxu0 %v1662
    %2317 = vmatprep.subr.bf16.mxu0 0
    %2318 = vmatpush2.bf16.msra.mxu0 %v1655
    %2319 = vmatprep.mubr.bf16.mxu0 %v593
    %2320 = vmatmul.mubr.bf16.gmra.mxu0 %v592
    %v2321 = vpop.f32.mrf.mxu0
    %v2322 = vadd.f32 %v881, %v2321
    %v2323 = vpop.f32.mrf.mxu0
    %v2324 = vpop.f32.mrf.mxu0
    %v2325 = vpop.f32.mrf.mxu0
    %2326 = vdwg.mxu0
    %2327 = vmatprep.subr.bf16.mxu0 0
    %2328 = vmatpush1.bf16.msra.mxu0 %v1760
    %2329 = vmatprep.subr.bf16.mxu0 0
    %2330 = vmatpush1.bf16.msra.mxu0 %v1753
    %2331 = vmatprep.subr.bf16.mxu0 0
    %2332 = vmatpush1.bf16.msra.mxu0 %v1746
    %2333 = vmatprep.subr.bf16.mxu0 0
    %2334 = vmatpush1.bf16.msra.mxu0 %v1739
    %2335 = vmatprep.subr.bf16.mxu0 0
    %2336 = vmatpush1.bf16.msra.mxu0 %v1732
    %2337 = vmatprep.subr.bf16.mxu0 0
    %2338 = vmatpush1.bf16.msra.mxu0 %v1725
    %2339 = vmatprep.subr.bf16.mxu0 0
    %2340 = vmatpush1.bf16.msra.mxu0 %v1718
    %2341 = vmatprep.subr.bf16.mxu0 0
    %2342 = vmatpush1.bf16.msra.mxu0 %v1711
    %2343 = vmatprep.subr.bf16.mxu0 0
    %2344 = vmatpush2.bf16.msra.mxu0 %v1816
    %2345 = vmatprep.subr.bf16.mxu0 0
    %2346 = vmatpush2.bf16.msra.mxu0 %v1809
    %2347 = vmatprep.subr.bf16.mxu0 0
    %2348 = vmatpush2.bf16.msra.mxu0 %v1802
    %2349 = vmatprep.subr.bf16.mxu0 0
    %2350 = vmatpush2.bf16.msra.mxu0 %v1795
    %2351 = vmatprep.subr.bf16.mxu0 0
    %2352 = vmatpush2.bf16.msra.mxu0 %v1788
    %2353 = vmatprep.subr.bf16.mxu0 0
    %2354 = vmatpush2.bf16.msra.mxu0 %v1781
    %2355 = vmatprep.subr.bf16.mxu0 0
    %2356 = vmatpush2.bf16.msra.mxu0 %v1774
    %2357 = vmatprep.subr.bf16.mxu0 0
    %2358 = vmatpush2.bf16.msra.mxu0 %v1767
    %2359 = vmatprep.mubr.bf16.mxu0 %v595
    %2360 = vmatmul.mubr.bf16.gmra.mxu0 %v594
    %v2361 = vpop.f32.mrf.mxu0
    %v2362 = vadd.f32 %v2322, %v2361
    %v2363 = vpop.f32.mrf.mxu0
    %v2364 = vpop.f32.mrf.mxu0
    %v2365 = vpop.f32.mrf.mxu0
    %2366 = vdwg.mxu0
    %v2367 = vsub.f32 0.0, %v2117
    %v2368 = vsub.f32 0.0, %v2119
    %v2369 = vsub.f32 0.0, %v2199
    %v2370 = vsub.f32 0.0, %v2201
    %v2371 = vsub.f32 0.0, %v2281
    %v2372 = vsub.f32 0.0, %v2283
    %v2373 = vsub.f32 0.0, %v2362
    %v2374 = vmul.f32 %v2367, 1.442695
    %v2375 = vpow.pop %v2374
    %v2376 = vmul.f32 %v2368, 1.442695
    %v2377 = vpow.pop %v2376
    %v2378 = vmul.f32 %v2369, 1.442695
    %v2379 = vpow.pop %v2378
    %v2380 = vmul.f32 %v2370, 1.442695
    %v2381 = vpow.pop %v2380
    %v2382 = vmul.f32 %v2371, 1.442695
    %v2383 = vpow.pop %v2382
    %v2384 = vmul.f32 %v2372, 1.442695
    %v2385 = vpow.pop %v2384
    %v2386 = vmul.f32 %v2373, 1.442695
    %v2387 = vpow.pop %v2386
    %v2388 = vadd.f32 %v2375, 1.0
    %v2389 = vadd.f32 %v2377, 1.0
    %v2390 = vadd.f32 %v2379, 1.0
    %v2391 = vadd.f32 %v2381, 1.0
    %v2392 = vadd.f32 %v2383, 1.0
    %v2393 = vadd.f32 %v2385, 1.0
    %v2394 = vadd.f32 %v2387, 1.0
    %v2395 = vrcp.pop %v2388
    %v2396 = vrcp.pop %v2389
    %v2397 = vrcp.pop %v2390
    %v2398 = vrcp.pop %v2391
    %v2399 = vrcp.pop %v2392
    %v2400 = vrcp.pop %v2393
    %v2401 = vrcp.pop %v2394
    %2402 = vst [vmem:[#allocation2] sm:$0xff] %v2395
    %2403 = vst [vmem:[#allocation2 + $0x8] sm:$0xff] %v2396
    %2404 = vst [vmem:[#allocation2 + $0x10] sm:$0xff] %v2397
    %2405 = vst [vmem:[#allocation2 + $0x18] sm:$0xff] %v2398
    %2406 = vst [vmem:[#allocation2 + $0x20] sm:$0xff] %v2399
    %2407 = vst [vmem:[#allocation2 + $0x28] sm:$0xff] %v2400
    %vm2408 = vcmask 130048
    %2409 = vst.msk [vmem:[#allocation2 + $0x30] sm:$0xff] %vm2408, %v2401
    // Predicated region
    $region30: #{tpu_custom_call.1} parent=1 // pred_check
      _
    $region31: #{tpu_custom_call.1} parent=1 // pred_check_branch
      %2411 = sbr.rel (0) target = $region33
    $region32: #{tpu_custom_call.1} parent=1 // pred_region
      %s2413 = ssub.s32 896, 896
      %2414 = vsyncadd [#allocation3], %s2413
      %s2416 = sshll.u32 [#allocation2], 4
      %s2417 = int_to_ptr.vmem [resolvable:$true] %s2416
      %2419 = dma.vmem_to_hbm [thread:$0]  %s2417, 896, %s7, [#allocation3]
    $region33: #{tpu_custom_call.1} parent=1 // pred_fallthru
      _
    // Predicated region
    $region34: #{tpu_custom_call.1} parent=1 // pred_check
      _
    $region35: #{tpu_custom_call.1} parent=1 // pred_check_branch
      %2421 = sbr.rel (0) target = $region37
    $region36: #{tpu_custom_call.1} parent=1 // pred_region
      %2422 = dma.done [#allocation3], 896
    $region37: #{tpu_custom_call.1} parent=1 // pred_fallthru
      _
    %2423 = vsyncpa [#allocation3], 1

</llo_original>
